<compile_context>
chip_gen: v6e
topology: v6e:2x2x1
jax: 0.10.0
libtpu: 0.0.40
codegen_flags: <defaults>
</compile_context>

<pallas_src>
import functools

import jax
import jax.numpy as jnp
from jax import lax
from jax.experimental import pallas as pl
from jax.experimental.pallas import tpu as pltpu

_EPS = 1e-5
_LANE = 128


def _round_up(x, m):
    return (x + m - 1) // m * m


def _pad2d(a, rows, cols):
    pr, pc = rows - a.shape[0], cols - a.shape[1]
    if pr == 0 and pc == 0:
        return a
    return jnp.pad(a, ((0, pr), (0, pc)))


@functools.lru_cache(maxsize=1)
def _max_tile_m():
    """1024 on 128-MiB-VMEM parts (v5e/v6e), 512 on 64-MiB v7x."""
    try:
        info = pltpu.get_tpu_info()
        if getattr(info, "vmem_capacity_bytes", 0) >= 96 * 1024 * 1024:
            return 1024
    except Exception:
        pass
    return 512


# --------------------------------------------------------------------------
# Kernel A: conv-as-matmul + per-tile partial BN statistics.
# --------------------------------------------------------------------------
def _conv_stats_kernel(*refs, n_mm):
    """For each matmul m: y = p @ w (MXU, f32 acc), store y (bf16) and this
    tile's per-channel sum / sum-of-squares.  No cross-tile carry, so the M
    grid axis is 'parallel'."""
    ins, outs = refs[:2 * n_mm], refs[2 * n_mm:]
    for m in range(n_mm):
        p_ref, w_ref = ins[2 * m], ins[2 * m + 1]
        y_ref, ps_ref, pq_ref = outs[3 * m], outs[3 * m + 1], outs[3 * m + 2]
        y = jnp.dot(p_ref[...], w_ref[...], preferred_element_type=jnp.float32)
        y_ref[...] = y.astype(y_ref.dtype)
        ps_ref[...] = jnp.sum(y, axis=0, keepdims=True).reshape(ps_ref.shape)
        pq_ref[...] = jnp.sum(y * y, axis=0, keepdims=True).reshape(pq_ref.shape)


def _conv_stats(matmuls):
    """matmuls: list of (patches (M, K) bf16-castable, wmat (K, C)); shared M.

    Returns ([(y_padded (m_pad, Cp) bf16, ch_sum (Cp,), ch_sqsum (Cp,)), ...],
             m_pad, tile_m).
    """
    M = matmuls[0][0].shape[0]
    tile_m = min(_max_tile_m(), _round_up(M, 128))
    m_pad = _round_up(M, tile_m)
    num_tiles = m_pad // tile_m

    inputs, in_specs, out_shapes, out_specs = [], [], [], []
    flops, bytes_accessed = 0, 0
    for patches, wmat in matmuls:
        K = patches.shape[1]
        C = wmat.shape[1]
        Cp = _round_up(C, _LANE)            # lane-dense output channels
        p = _pad2d(patches.astype(jnp.bfloat16), m_pad, K)
        w = _pad2d(wmat.astype(jnp.bfloat16), K, Cp)
        inputs += [p, w]
        in_specs += [
            pl.BlockSpec((tile_m, K), lambda i: (i, 0)),
            # Constant-index weight block: stays resident across M tiles.
            # TODO(synk): pipeline_mode=pl.Buffered(1) to drop its 2nd buffer.
            pl.BlockSpec((K, Cp), lambda i: (0, 0)),
        ]
        out_shapes += [
            jax.ShapeDtypeStruct((m_pad, Cp), jnp.bfloat16),
            jax.ShapeDtypeStruct((num_tiles, 1, Cp), jnp.float32),
            jax.ShapeDtypeStruct((num_tiles, 1, Cp), jnp.float32),
        ]
        out_specs += [
            pl.BlockSpec((tile_m, Cp), lambda i: (i, 0)),
            pl.BlockSpec((1, 1, Cp), lambda i: (i, 0, 0)),
            pl.BlockSpec((1, 1, Cp), lambda i: (i, 0, 0)),
        ]
        flops += 2 * m_pad * K * Cp + 3 * m_pad * Cp
        bytes_accessed += (p.size + w.size + m_pad * Cp) * 2 \
            + 2 * num_tiles * Cp * 4

    kernel = functools.partial(_conv_stats_kernel, n_mm=len(matmuls))
    # ~21 MiB worst-case footprint at tile_m=512; ~40 MiB at tile_m=1024.
    vmem_limit = (64 if tile_m >= 1024 else 32) * 1024 * 1024

    outs = pl.pallas_call(
        kernel,
        out_shape=tuple(out_shapes),
        grid_spec=pltpu.PrefetchScalarGridSpec(
            num_scalar_prefetch=0,
            grid=(num_tiles,),
            in_specs=in_specs,
            out_specs=tuple(out_specs),
        ),
        compiler_params=pltpu.CompilerParams(
            dimension_semantics=("parallel",),   # no carried state -> both TCs
            vmem_limit_bytes=vmem_limit,
        ),
        cost_estimate=pl.CostEstimate(
            flops=int(flops), transcendentals=0,
            bytes_accessed=int(bytes_accessed)),
    )(*inputs)

    results = []
    for m in range(len(matmuls)):
        y, ps, pq = outs[3 * m], outs[3 * m + 1], outs[3 * m + 2]
        # Tiny cross-tile reduction (num_tiles x Cp) done by XLA.
        results.append((y, ps.sum(axis=(0, 1)), pq.sum(axis=(0, 1))))
    return results, m_pad, tile_m


def _affine_params(ch_sum, ch_sqsum, gamma, beta, m_real, cp):
    """Full-batch BN statistics -> per-channel (scale, shift) rows, padded."""
    c = gamma.shape[0]
    g = jnp.pad(gamma.astype(jnp.float32), (0, cp - c))
    b = jnp.pad(beta.astype(jnp.float32), (0, cp - c))
    mean = ch_sum / m_real
    # Single-pass E[y^2] - mean^2 in f32 (clamped at 0).
    # TODO(synk): Welford-style combine of per-tile partials if cancellation
    # ever becomes an issue at ResNet scale.
    var = jnp.maximum(ch_sqsum / m_real - mean * mean, 0.0)
    scale = g * lax.rsqrt(var + _EPS)
    shift = b - mean * scale
    return scale.reshape(1, cp), shift.reshape(1, cp)


# --------------------------------------------------------------------------
# Kernel B: BN affine (+shortcut) (+ReLU) epilogue.
# --------------------------------------------------------------------------
def _bn_apply_kernel(*refs, mode, apply_relu):
    if mode == "proj":
        y_ref, sca_ref, shf_ref, ysc_ref, scas_ref, shfs_ref, o_ref = refs
    elif mode == "identity":
        y_ref, sca_ref, shf_ref, sc_ref, o_ref = refs
    else:
        y_ref, sca_ref, shf_ref, o_ref = refs

    out = y_ref[...].astype(jnp.float32) * sca_ref[...] + shf_ref[...]
    if mode == "proj":
        out = out + ysc_ref[...].astype(jnp.float32) * scas_ref[...] + shfs_ref[...]
    elif mode == "identity":
        out = out + sc_ref[...].astype(jnp.float32)      # cast in-kernel
    if apply_relu:
        out = jnp.maximum(out, 0.0)
    o_ref[...] = out.astype(o_ref.dtype)


def _bn_apply(y_pad, scale, shift, *, m_real, c, tile_m,
              identity_sc=None, proj=None, apply_relu=True,
              out_dtype=jnp.bfloat16):
    m_pad, cp = y_pad.shape
    num_tiles = m_pad // tile_m

    inputs = [y_pad, scale, shift]
    in_specs = [
        pl.BlockSpec((tile_m, cp), lambda i: (i, 0)),
        pl.BlockSpec((1, cp), lambda i: (0, 0)),
        pl.BlockSpec((1, cp), lambda i: (0, 0)),
    ]
    mode = "none"
    if proj is not None:
        mode = "proj"
        ysc_pad, scale_s, shift_s = proj
        inputs += [ysc_pad, scale_s, shift_s]
        in_specs += [
            pl.BlockSpec((tile_m, cp), lambda i: (i, 0)),
            pl.BlockSpec((1, cp), lambda i: (0, 0)),
            pl.BlockSpec((1, cp), lambda i: (0, 0)),
        ]
    elif identity_sc is not None:
        mode = "identity"
        sc_pad = _pad2d(identity_sc.astype(jnp.bfloat16), m_pad, cp)
        inputs.append(sc_pad)
        in_specs.append(pl.BlockSpec((tile_m, cp), lambda i: (i, 0)))

    kernel = functools.partial(_bn_apply_kernel, mode=mode, apply_relu=apply_relu)
    bytes_accessed = sum(int(a.size) * a.dtype.itemsize for a in inputs) \
        + m_pad * cp * jnp.dtype(out_dtype).itemsize

    out = pl.pallas_call(
        kernel,
        out_shape=jax.ShapeDtypeStruct((m_pad, cp), out_dtype),
        grid_spec=pltpu.PrefetchScalarGridSpec(
            num_scalar_prefetch=0,
            grid=(num_tiles,),
            in_specs=in_specs,
            out_specs=pl.BlockSpec((tile_m, cp), lambda i: (i, 0)),
        ),
        compiler_params=pltpu.CompilerParams(
            dimension_semantics=("parallel",),
            vmem_limit_bytes=32 * 1024 * 1024,
        ),
        cost_estimate=pl.CostEstimate(
            flops=int(6 * m_pad * cp), transcendentals=0,
            bytes_accessed=int(bytes_accessed)),
    )(*inputs)
    return out[:m_real, :c]


# --------------------------------------------------------------------------
# Wrapper-side im2col (XLA).  TODO(synk): replace with in-kernel NHWC halo
# tiles (9 shifted dots) to avoid the 9x HBM expansion.
# --------------------------------------------------------------------------
def _im2col(x_nhwc, kh, kw, stride, padding):
    N, H, W, C = x_nhwc.shape
    xp = jnp.pad(x_nhwc, ((0, 0), (padding, padding), (padding, padding), (0, 0)))
    OH = (H + 2 * padding - kh) // stride + 1
    OW = (W + 2 * padding - kw) // stride + 1
    cols = []
    for i in range(kh):
        for j in range(kw):
            cols.append(
                xp[:, i:i + stride * OH:stride, j:j + stride * OW:stride, :])
    return jnp.concatenate(cols, axis=-1), OH, OW


class BasicBlockPallas:
    expansion = 1

    def __init__(self, key, in_planes, planes, stride=1):
        self.in_planes = in_planes
        self.planes = planes
        self.stride = stride
        k = jax.random.split(key, 3)
        # Conv weights stored (KH, KW, Cin, Cout), matching im2col ordering.
        self.w1 = 0.1 * jax.random.normal(k[0], (3, 3, in_planes, planes), jnp.float32)
        self.w2 = 0.1 * jax.random.normal(k[1], (3, 3, planes, planes), jnp.float32)
        self.g1 = jnp.ones((planes,), jnp.float32)
        self.b1 = jnp.zeros((planes,), jnp.float32)
        self.g2 = jnp.ones((planes,), jnp.float32)
        self.b2 = jnp.zeros((planes,), jnp.float32)
        self.has_proj = stride != 1 or in_planes != self.expansion * planes
        if self.has_proj:
            self.ws = 0.1 * jax.random.normal(
                k[2], (1, 1, in_planes, self.expansion * planes), jnp.float32)
            self.gs = jnp.ones((self.expansion * planes,), jnp.float32)
            self.bs = jnp.zeros((self.expansion * planes,), jnp.float32)

    def __call__(self, x_nchw):
        # NCHW -> NHWC; bf16 feeds the MXU (f32 accumulation in-kernel).
        x = jnp.transpose(x_nchw, (0, 2, 3, 1)).astype(jnp.bfloat16)
        N, H, W, Cin = x.shape
        planes = self.planes

        # ---- conv1 (3x3, stride): matmul + stats, then BN1 + ReLU ----
        p1, OH, OW = _im2col(x, 3, 3, self.stride, 1)
        M1 = N * OH * OW
        (res1,), _, tile_m1 = _conv_stats(
            [(p1.reshape(M1, 9 * Cin), self.w1.reshape(9 * Cin, planes))])
        y1, s1, q1 = res1
        cp1 = y1.shape[1]
        sc1, sh1 = _affine_params(s1, q1, self.g1, self.b1, M1, cp1)
        out1 = _bn_apply(y1, sc1, sh1, m_real=M1, c=planes, tile_m=tile_m1,
                         apply_relu=True)
        out1_nhwc = out1.reshape(N, OH, OW, planes)

        # ---- conv2 (3x3, s=1) (+ fused 1x1 projection matmul) ----
        p2, OH2, OW2 = _im2col(out1_nhwc, 3, 3, 1, 1)
        M2 = N * OH2 * OW2
        p2 = p2.reshape(M2, 9 * planes)
        w2m = self.w2.reshape(9 * planes, planes)

        if self.has_proj:
            # TODO(synk): fold this strided gather into the kernel via a
            # strided BlockSpec / pl.ds on the NHWC activation.
            xs = x[:, ::self.stride, ::self.stride, :].reshape(M2, Cin)
            wsm = self.ws.reshape(Cin, self.expansion * planes)
            results, _, tile_m2 = _conv_stats([(p2, w2m), (xs, wsm)])
            (y2, s2, q2), (ysc, ss, qs) = results
            cp2 = y2.shape[1]
            sc2, sh2 = _affine_params(s2, q2, self.g2, self.b2, M2, cp2)
            scs, shs = _affine_params(ss, qs, self.gs, self.bs, M2, cp2)
            out = _bn_apply(y2, sc2, sh2, m_real=M2, c=planes, tile_m=tile_m2,
                            proj=(ysc, scs, shs), apply_relu=True)
        else:
            results, _, tile_m2 = _conv_stats([(p2, w2m)])
            (y2, s2, q2), = results
            cp2 = y2.shape[1]
            sc2, sh2 = _affine_params(s2, q2, self.g2, self.b2, M2, cp2)
            out = _bn_apply(y2, sc2, sh2, m_real=M2, c=planes, tile_m=tile_m2,
                            identity_sc=x.reshape(M2, planes), apply_relu=True)

        out = out.reshape(N, OH2, OW2, planes)
        # bf16 through the kernels (halves store/transpose traffic); one cast.
        return jnp.transpose(out, (0, 3, 1, 2)).astype(jnp.float32)


def _reference_block(block, x_nchw):
    """Pure-JAX f32 reference of the BasicBlock forward (training-mode BN)."""
    x = jnp.transpose(x_nchw, (0, 2, 3, 1)).astype(jnp.float32)

    def conv(a, w, stride):
        pad = (w.shape[0] - 1) // 2
        return lax.conv_general_dilated(
            a, w.astype(jnp.float32), window_strides=(stride, stride),
            padding=[(pad, pad), (pad, pad)],
            dimension_numbers=("NHWC", "HWIO", "NHWC"))

    def bn(y, g, b):
        mean = jnp.mean(y, axis=(0, 1, 2), keepdims=True)
        var = jnp.mean((y - mean) ** 2, axis=(0, 1, 2), keepdims=True)
        return g * (y - mean) * lax.rsqrt(var + _EPS) + b

    out = jax.nn.relu(bn(conv(x, block.w1, block.stride), block.g1, block.b1))
    out = bn(conv(out, block.w2, 1), block.g2, block.b2)
    if block.has_proj:
        sc = bn(conv(x, block.ws, block.stride), block.gs, block.bs)
    else:
        sc = x
    out = jax.nn.relu(out + sc)
    return jnp.transpose(out, (0, 3, 1, 2))


if __name__ == "__main__":
    key = jax.random.PRNGKey(0)
    kx, kp = jax.random.split(key)

    # Small shapes consistent with the module: N=2, in_planes=4, H=W=16.
    N, Cin, H, W = 2, 4, 16, 16
    planes, stride = 8, 2   # exercises the fused projection-shortcut path

    x = jax.random.normal(kx, (N, Cin, H, W), jnp.float32)
    block = BasicBlockPallas(kp, Cin, planes, stride=stride)

    fwd = jax.jit(block.__call__)
    out = jax.block_until_ready(fwd(x))

    assert out.shape == (N, planes, H // stride, W // stride)
    assert bool(jnp.all(jnp.isfinite(out)))
    assert bool(jnp.all(out >= 0.0))   # final ReLU

    ref = _reference_block(block, x)
    max_diff = float(jnp.max(jnp.abs(out.astype(jnp.float32) - ref)))
    assert max_diff < 0.2, f"mismatch vs pure-JAX reference: {max_diff}"

    print("KERNEL_OK")
</pallas_src>

<mosaic_0001>
module attributes {stable_mosaic.version = 11 : i64} {
  func.func @_conv_stats_kernel(%arg0: i32, %arg1: memref<128x36xbf16, #tpu.memory_space<vmem>>, %arg2: memref<36x128xbf16, #tpu.memory_space<vmem>>, %arg3: memref<128x128xbf16, #tpu.memory_space<vmem>>, %arg4: memref<1x1x128xf32, #tpu.memory_space<vmem>>, %arg5: memref<1x1x128xf32, #tpu.memory_space<vmem>>) attributes {dimension_semantics = [#tpu.dimension_semantics<parallel>], iteration_bounds = array<i64: 1>, scalar_prefetch = 0 : i64, scratch_operands = 0 : i64, tpu.core_type = #tpu.core_type<tc>, window_params = [{transform_indices = @transform_0, window_bounds = array<i64: 128, 36>}, {pipeline_mode = #tpu.pipeline_mode<synchronous>, transform_indices = @transform_1, window_bounds = array<i64: 36, 128>}, {transform_indices = @transform_2, window_bounds = array<i64: 128, 128>}, {transform_indices = @transform_3, window_bounds = array<i64: 1, 1, 128>}, {transform_indices = @transform_4, window_bounds = array<i64: 1, 1, 128>}]} {
    %c0 = arith.constant 0 : index
    %c0_0 = arith.constant 0 : index
    %0 = vector.load %arg1[%c0, %c0_0] : memref<128x36xbf16, #tpu.memory_space<vmem>>, vector<128x36xbf16>
    %c0_1 = arith.constant 0 : index
    %c0_2 = arith.constant 0 : index
    %1 = vector.load %arg2[%c0_1, %c0_2] : memref<36x128xbf16, #tpu.memory_space<vmem>>, vector<36x128xbf16>
    %cst = arith.constant dense<0.000000e+00> : vector<128x128xf32>
    %2 = tpu.matmul %0, %1, %cst {dimension_numbers = #tpu.dot_dimension_numbers<[1], [0], [0], [1], [0, 0, 1, 1], [], []>} : vector<128x36xbf16>, vector<36x128xbf16>, vector<128x128xf32> -> vector<128x128xf32>
    %3 = arith.truncf %2 : vector<128x128xf32> to vector<128x128xbf16>
    %c0_3 = arith.constant 0 : index
    %c0_4 = arith.constant 0 : index
    %4 = vector.load %arg3[%c0_3, %c0_4] : memref<128x128xbf16, #tpu.memory_space<vmem>>, vector<128x128xbf16>
    tpu.vector_store %arg3[%c0_3, %c0_4], %3 {strides = array<i32>} : memref<128x128xbf16, #tpu.memory_space<vmem>>, vector<128x128xbf16>,
    %cst_5 = arith.constant dense<0.000000e+00> : vector<128xf32>
    %5 = vector.multi_reduction <add>, %2, %cst_5 [0] : vector<128x128xf32> to vector<128xf32>
    %6 = vector.shape_cast %5 : vector<128xf32> to vector<1x128xf32>
    %7 = vector.shape_cast %6 : vector<1x128xf32> to vector<1x1x128xf32>
    %c0_6 = arith.constant 0 : index
    %c0_7 = arith.constant 0 : index
    %c0_8 = arith.constant 0 : index
    %8 = vector.load %arg4[%c0_6, %c0_7, %c0_8] : memref<1x1x128xf32, #tpu.memory_space<vmem>>, vector<1x1x128xf32>
    tpu.vector_store %arg4[%c0_6, %c0_7, %c0_8], %7 {strides = array<i32>} : memref<1x1x128xf32, #tpu.memory_space<vmem>>, vector<1x1x128xf32>,
    %9 = arith.mulf %2, %2 : vector<128x128xf32>
    %cst_9 = arith.constant dense<0.000000e+00> : vector<128xf32>
    %10 = vector.multi_reduction <add>, %9, %cst_9 [0] : vector<128x128xf32> to vector<128xf32>
    %11 = vector.shape_cast %10 : vector<128xf32> to vector<1x128xf32>
    %12 = vector.shape_cast %11 : vector<1x128xf32> to vector<1x1x128xf32>
    %c0_10 = arith.constant 0 : index
    %c0_11 = arith.constant 0 : index
    %c0_12 = arith.constant 0 : index
    %13 = vector.load %arg5[%c0_10, %c0_11, %c0_12] : memref<1x1x128xf32, #tpu.memory_space<vmem>>, vector<1x1x128xf32>
    tpu.vector_store %arg5[%c0_10, %c0_11, %c0_12], %12 {strides = array<i32>} : memref<1x1x128xf32, #tpu.memory_space<vmem>>, vector<1x1x128xf32>,
    return
  }
  func.func @transform_0(%arg0: i32) -> (i32, i32) {
    %c0_i32 = arith.constant 0 : i32
    %c0_i32_0 = arith.constant 0 : i32
    return %arg0, %c0_i32 : i32, i32
  }
  func.func @transform_1(%arg0: i32) -> (i32, i32) {
    %c0_i32 = arith.constant 0 : i32
    %c0_i32_0 = arith.constant 0 : i32
    %c0_i32_1 = arith.constant 0 : i32
    return %c0_i32, %c0_i32_0 : i32, i32
  }
  func.func @transform_2(%arg0: i32) -> (i32, i32) {
    %c0_i32 = arith.constant 0 : i32
    %c0_i32_0 = arith.constant 0 : i32
    return %arg0, %c0_i32 : i32, i32
  }
  func.func @transform_3(%arg0: i32) -> (i32, i32, i32) {
    %c0_i32 = arith.constant 0 : i32
    %c0_i32_0 = arith.constant 0 : i32
    %c0_i32_1 = arith.constant 0 : i32
    return %arg0, %c0_i32, %c0_i32_0 : i32, i32, i32
  }
  func.func @transform_4(%arg0: i32) -> (i32, i32, i32) {
    %c0_i32 = arith.constant 0 : i32
    %c0_i32_0 = arith.constant 0 : i32
    %c0_i32_1 = arith.constant 0 : i32
    return %arg0, %c0_i32, %c0_i32_0 : i32, i32, i32
  }
}

module attributes {stable_mosaic.version = 11 : i64} {
  func.func @_bn_apply_kernel(%arg0: i32, %arg1: memref<128x128xbf16, #tpu.memory_space<vmem>>, %arg2: memref<1x128xf32, #tpu.memory_space<vmem>>, %arg3: memref<1x128xf32, #tpu.memory_space<vmem>>, %arg4: memref<128x128xbf16, #tpu.memory_space<vmem>>) attributes {dimension_semantics = [#tpu.dimension_semantics<parallel>], iteration_bounds = array<i64: 1>, scalar_prefetch = 0 : i64, scratch_operands = 0 : i64, tpu.core_type = #tpu.core_type<tc>, window_params = [{transform_indices = @transform_0, window_bounds = array<i64: 128, 128>}, {pipeline_mode = #tpu.pipeline_mode<synchronous>, transform_indices = @transform_1, window_bounds = array<i64: 1, 128>}, {pipeline_mode = #tpu.pipeline_mode<synchronous>, transform_indices = @transform_2, window_bounds = array<i64: 1, 128>}, {transform_indices = @transform_3, window_bounds = array<i64: 128, 128>}]} {
    %c0 = arith.constant 0 : index
    %c0_0 = arith.constant 0 : index
    %0 = vector.load %arg1[%c0, %c0_0] : memref<128x128xbf16, #tpu.memory_space<vmem>>, vector<128x128xbf16>
    %1 = arith.extf %0 : vector<128x128xbf16> to vector<128x128xf32>
    %c0_1 = arith.constant 0 : index
    %c0_2 = arith.constant 0 : index
    %2 = vector.load %arg2[%c0_1, %c0_2] : memref<1x128xf32, #tpu.memory_space<vmem>>, vector<1x128xf32>
    %3 = vector.broadcast %2 : vector<1x128xf32> to vector<128x128xf32>
    %4 = arith.mulf %1, %3 : vector<128x128xf32>
    %c0_3 = arith.constant 0 : index
    %c0_4 = arith.constant 0 : index
    %5 = vector.load %arg3[%c0_3, %c0_4] : memref<1x128xf32, #tpu.memory_space<vmem>>, vector<1x128xf32>
    %6 = vector.broadcast %5 : vector<1x128xf32> to vector<128x128xf32>
    %7 = arith.addf %4, %6 : vector<128x128xf32>
    %cst = arith.constant 0.000000e+00 : f32
    %8 = vector.broadcast %cst : f32 to vector<128x128xf32>
    %9 = arith.maximumf %7, %8 : vector<128x128xf32>
    %10 = arith.truncf %9 : vector<128x128xf32> to vector<128x128xbf16>
    %c0_5 = arith.constant 0 : index
    %c0_6 = arith.constant 0 : index
    %11 = vector.load %arg4[%c0_5, %c0_6] : memref<128x128xbf16, #tpu.memory_space<vmem>>, vector<128x128xbf16>
    tpu.vector_store %arg4[%c0_5, %c0_6], %10 {strides = array<i32>} : memref<128x128xbf16, #tpu.memory_space<vmem>>, vector<128x128xbf16>,
    return
  }
  func.func @transform_0(%arg0: i32) -> (i32, i32) {
    %c0_i32 = arith.constant 0 : i32
    %c0_i32_0 = arith.constant 0 : i32
    return %arg0, %c0_i32 : i32, i32
  }
  func.func @transform_1(%arg0: i32) -> (i32, i32) {
    %c0_i32 = arith.constant 0 : i32
    %c0_i32_0 = arith.constant 0 : i32
    %c0_i32_1 = arith.constant 0 : i32
    return %c0_i32, %c0_i32_0 : i32, i32
  }
  func.func @transform_2(%arg0: i32) -> (i32, i32) {
    %c0_i32 = arith.constant 0 : i32
    %c0_i32_0 = arith.constant 0 : i32
    %c0_i32_1 = arith.constant 0 : i32
    return %c0_i32, %c0_i32_0 : i32, i32
  }
  func.func @transform_3(%arg0: i32) -> (i32, i32) {
    %c0_i32 = arith.constant 0 : i32
    %c0_i32_0 = arith.constant 0 : i32
    return %arg0, %c0_i32 : i32, i32
  }
}

module attributes {stable_mosaic.version = 11 : i64} {
  func.func @_conv_stats_kernel(%arg0: i32, %arg1: memref<128x72xbf16, #tpu.memory_space<vmem>>, %arg2: memref<72x128xbf16, #tpu.memory_space<vmem>>, %arg3: memref<128x4xbf16, #tpu.memory_space<vmem>>, %arg4: memref<4x128xbf16, #tpu.memory_space<vmem>>, %arg5: memref<128x128xbf16, #tpu.memory_space<vmem>>, %arg6: memref<1x1x128xf32, #tpu.memory_space<vmem>>, %arg7: memref<1x1x128xf32, #tpu.memory_space<vmem>>, %arg8: memref<128x128xbf16, #tpu.memory_space<vmem>>, %arg9: memref<1x1x128xf32, #tpu.memory_space<vmem>>, %arg10: memref<1x1x128xf32, #tpu.memory_space<vmem>>) attributes {dimension_semantics = [#tpu.dimension_semantics<parallel>], iteration_bounds = array<i64: 1>, scalar_prefetch = 0 : i64, scratch_operands = 0 : i64, tpu.core_type = #tpu.core_type<tc>, window_params = [{transform_indices = @transform_0, window_bounds = array<i64: 128, 72>}, {pipeline_mode = #tpu.pipeline_mode<synchronous>, transform_indices = @transform_1, window_bounds = array<i64: 72, 128>}, {transform_indices = @transform_2, window_bounds = array<i64: 128, 4>}, {pipeline_mode = #tpu.pipeline_mode<synchronous>, transform_indices = @transform_3, window_bounds = array<i64: 4, 128>}, {transform_indices = @transform_4, window_bounds = array<i64: 128, 128>}, {transform_indices = @transform_5, window_bounds = array<i64: 1, 1, 128>}, {transform_indices = @transform_6, window_bounds = array<i64: 1, 1, 128>}, {transform_indices = @transform_7, window_bounds = array<i64: 128, 128>}, {transform_indices = @transform_8, window_bounds = array<i64: 1, 1, 128>}, {transform_indices = @transform_9, window_bounds = array<i64: 1, 1, 128>}]} {
    %c0 = arith.constant 0 : index
    %c0_0 = arith.constant 0 : index
    %0 = vector.load %arg1[%c0, %c0_0] : memref<128x72xbf16, #tpu.memory_space<vmem>>, vector<128x72xbf16>
    %c0_1 = arith.constant 0 : index
    %c0_2 = arith.constant 0 : index
    %1 = vector.load %arg2[%c0_1, %c0_2] : memref<72x128xbf16, #tpu.memory_space<vmem>>, vector<72x128xbf16>
    %cst = arith.constant dense<0.000000e+00> : vector<128x128xf32>
    %2 = tpu.matmul %0, %1, %cst {dimension_numbers = #tpu.dot_dimension_numbers<[1], [0], [0], [1], [0, 0, 1, 1], [], []>} : vector<128x72xbf16>, vector<72x128xbf16>, vector<128x128xf32> -> vector<128x128xf32>
    %3 = arith.truncf %2 : vector<128x128xf32> to vector<128x128xbf16>
    %c0_3 = arith.constant 0 : index
    %c0_4 = arith.constant 0 : index
    %4 = vector.load %arg5[%c0_3, %c0_4] : memref<128x128xbf16, #tpu.memory_space<vmem>>, vector<128x128xbf16>
    tpu.vector_store %arg5[%c0_3, %c0_4], %3 {strides = array<i32>} : memref<128x128xbf16, #tpu.memory_space<vmem>>, vector<128x128xbf16>,
    %cst_5 = arith.constant dense<0.000000e+00> : vector<128xf32>
    %5 = vector.multi_reduction <add>, %2, %cst_5 [0] : vector<128x128xf32> to vector<128xf32>
    %6 = vector.shape_cast %5 : vector<128xf32> to vector<1x128xf32>
    %7 = vector.shape_cast %6 : vector<1x128xf32> to vector<1x1x128xf32>
    %c0_6 = arith.constant 0 : index
    %c0_7 = arith.constant 0 : index
    %c0_8 = arith.constant 0 : index
    %8 = vector.load %arg6[%c0_6, %c0_7, %c0_8] : memref<1x1x128xf32, #tpu.memory_space<vmem>>, vector<1x1x128xf32>
    tpu.vector_store %arg6[%c0_6, %c0_7, %c0_8], %7 {strides = array<i32>} : memref<1x1x128xf32, #tpu.memory_space<vmem>>, vector<1x1x128xf32>,
    %9 = arith.mulf %2, %2 : vector<128x128xf32>
    %cst_9 = arith.constant dense<0.000000e+00> : vector<128xf32>
    %10 = vector.multi_reduction <add>, %9, %cst_9 [0] : vector<128x128xf32> to vector<128xf32>
    %11 = vector.shape_cast %10 : vector<128xf32> to vector<1x128xf32>
    %12 = vector.shape_cast %11 : vector<1x128xf32> to vector<1x1x128xf32>
    %c0_10 = arith.constant 0 : index
    %c0_11 = arith.constant 0 : index
    %c0_12 = arith.constant 0 : index
    %13 = vector.load %arg7[%c0_10, %c0_11, %c0_12] : memref<1x1x128xf32, #tpu.memory_space<vmem>>, vector<1x1x128xf32>
    tpu.vector_store %arg7[%c0_10, %c0_11, %c0_12], %12 {strides = array<i32>} : memref<1x1x128xf32, #tpu.memory_space<vmem>>, vector<1x1x128xf32>,
    %c0_13 = arith.constant 0 : index
    %c0_14 = arith.constant 0 : index
    %14 = vector.load %arg3[%c0_13, %c0_14] : memref<128x4xbf16, #tpu.memory_space<vmem>>, vector<128x4xbf16>
    %c0_15 = arith.constant 0 : index
    %c0_16 = arith.constant 0 : index
    %15 = vector.load %arg4[%c0_15, %c0_16] : memref<4x128xbf16, #tpu.memory_space<vmem>>, vector<4x128xbf16>
    %cst_17 = arith.constant dense<0.000000e+00> : vector<128x128xf32>
    %16 = tpu.matmul %14, %15, %cst_17 {dimension_numbers = #tpu.dot_dimension_numbers<[1], [0], [0], [1], [0, 0, 1, 1], [], []>} : vector<128x4xbf16>, vector<4x128xbf16>, vector<128x128xf32> -> vector<128x128xf32>
    %17 = arith.truncf %16 : vector<128x128xf32> to vector<128x128xbf16>
    %c0_18 = arith.constant 0 : index
    %c0_19 = arith.constant 0 : index
    %18 = vector.load %arg8[%c0_18, %c0_19] : memref<128x128xbf16, #tpu.memory_space<vmem>>, vector<128x128xbf16>
    tpu.vector_store %arg8[%c0_18, %c0_19], %17 {strides = array<i32>} : memref<128x128xbf16, #tpu.memory_space<vmem>>, vector<128x128xbf16>,
    %cst_20 = arith.constant dense<0.000000e+00> : vector<128xf32>
    %19 = vector.multi_reduction <add>, %16, %cst_20 [0] : vector<128x128xf32> to vector<128xf32>
    %20 = vector.shape_cast %19 : vector<128xf32> to vector<1x128xf32>
    %21 = vector.shape_cast %20 : vector<1x128xf32> to vector<1x1x128xf32>
    %c0_21 = arith.constant 0 : index
    %c0_22 = arith.constant 0 : index
    %c0_23 = arith.constant 0 : index
    %22 = vector.load %arg9[%c0_21, %c0_22, %c0_23] : memref<1x1x128xf32, #tpu.memory_space<vmem>>, vector<1x1x128xf32>
    tpu.vector_store %arg9[%c0_21, %c0_22, %c0_23], %21 {strides = array<i32>} : memref<1x1x128xf32, #tpu.memory_space<vmem>>, vector<1x1x128xf32>,
    %23 = arith.mulf %16, %16 : vector<128x128xf32>
    %cst_24 = arith.constant dense<0.000000e+00> : vector<128xf32>
    %24 = vector.multi_reduction <add>, %23, %cst_24 [0] : vector<128x128xf32> to vector<128xf32>
    %25 = vector.shape_cast %24 : vector<128xf32> to vector<1x128xf32>
    %26 = vector.shape_cast %25 : vector<1x128xf32> to vector<1x1x128xf32>
    %c0_25 = arith.constant 0 : index
    %c0_26 = arith.constant 0 : index
    %c0_27 = arith.constant 0 : index
    %27 = vector.load %arg10[%c0_25, %c0_26, %c0_27] : memref<1x1x128xf32, #tpu.memory_space<vmem>>, vector<1x1x128xf32>
    tpu.vector_store %arg10[%c0_25, %c0_26, %c0_27], %26 {strides = array<i32>} : memref<1x1x128xf32, #tpu.memory_space<vmem>>, vector<1x1x128xf32>,
    return
  }
  func.func @transform_0(%arg0: i32) -> (i32, i32) {
    %c0_i32 = arith.constant 0 : i32
    %c0_i32_0 = arith.constant 0 : i32
    return %arg0, %c0_i32 : i32, i32
  }
  func.func @transform_1(%arg0: i32) -> (i32, i32) {
    %c0_i32 = arith.constant 0 : i32
    %c0_i32_0 = arith.constant 0 : i32
    %c0_i32_1 = arith.constant 0 : i32
    return %c0_i32, %c0_i32_0 : i32, i32
  }
  func.func @transform_2(%arg0: i32) -> (i32, i32) {
    %c0_i32 = arith.constant 0 : i32
    %c0_i32_0 = arith.constant 0 : i32
    return %arg0, %c0_i32 : i32, i32
  }
  func.func @transform_3(%arg0: i32) -> (i32, i32) {
    %c0_i32 = arith.constant 0 : i32
    %c0_i32_0 = arith.constant 0 : i32
    %c0_i32_1 = arith.constant 0 : i32
    return %c0_i32, %c0_i32_0 : i32, i32
  }
  func.func @transform_4(%arg0: i32) -> (i32, i32) {
    %c0_i32 = arith.constant 0 : i32
    %c0_i32_0 = arith.constant 0 : i32
    return %arg0, %c0_i32 : i32, i32
  }
  func.func @transform_5(%arg0: i32) -> (i32, i32, i32) {
    %c0_i32 = arith.constant 0 : i32
    %c0_i32_0 = arith.constant 0 : i32
    %c0_i32_1 = arith.constant 0 : i32
    return %arg0, %c0_i32, %c0_i32_0 : i32, i32, i32
  }
  func.func @transform_6(%arg0: i32) -> (i32, i32, i32) {
    %c0_i32 = arith.constant 0 : i32
    %c0_i32_0 = arith.constant 0 : i32
    %c0_i32_1 = arith.constant 0 : i32
    return %arg0, %c0_i32, %c0_i32_0 : i32, i32, i32
  }
  func.func @transform_7(%arg0: i32) -> (i32, i32) {
    %c0_i32 = arith.constant 0 : i32
    %c0_i32_0 = arith.constant 0 : i32
    return %arg0, %c0_i32 : i32, i32
  }
  func.func @transform_8(%arg0: i32) -> (i32, i32, i32) {
    %c0_i32 = arith.constant 0 : i32
    %c0_i32_0 = arith.constant 0 : i32
    %c0_i32_1 = arith.constant 0 : i32
    return %arg0, %c0_i32, %c0_i32_0 : i32, i32, i32
  }
  func.func @transform_9(%arg0: i32) -> (i32, i32, i32) {
    %c0_i32 = arith.constant 0 : i32
    %c0_i32_0 = arith.constant 0 : i32
    %c0_i32_1 = arith.constant 0 : i32
    return %arg0, %c0_i32, %c0_i32_0 : i32, i32, i32
  }
}

module attributes {stable_mosaic.version = 11 : i64} {
  func.func @_bn_apply_kernel(%arg0: i32, %arg1: memref<128x128xbf16, #tpu.memory_space<vmem>>, %arg2: memref<1x128xf32, #tpu.memory_space<vmem>>, %arg3: memref<1x128xf32, #tpu.memory_space<vmem>>, %arg4: memref<128x128xbf16, #tpu.memory_space<vmem>>, %arg5: memref<1x128xf32, #tpu.memory_space<vmem>>, %arg6: memref<1x128xf32, #tpu.memory_space<vmem>>, %arg7: memref<128x128xbf16, #tpu.memory_space<vmem>>) attributes {dimension_semantics = [#tpu.dimension_semantics<parallel>], iteration_bounds = array<i64: 1>, scalar_prefetch = 0 : i64, scratch_operands = 0 : i64, tpu.core_type = #tpu.core_type<tc>, window_params = [{transform_indices = @transform_0, window_bounds = array<i64: 128, 128>}, {pipeline_mode = #tpu.pipeline_mode<synchronous>, transform_indices = @transform_1, window_bounds = array<i64: 1, 128>}, {pipeline_mode = #tpu.pipeline_mode<synchronous>, transform_indices = @transform_2, window_bounds = array<i64: 1, 128>}, {transform_indices = @transform_3, window_bounds = array<i64: 128, 128>}, {pipeline_mode = #tpu.pipeline_mode<synchronous>, transform_indices = @transform_4, window_bounds = array<i64: 1, 128>}, {pipeline_mode = #tpu.pipeline_mode<synchronous>, transform_indices = @transform_5, window_bounds = array<i64: 1, 128>}, {transform_indices = @transform_6, window_bounds = array<i64: 128, 128>}]} {
    %c0 = arith.constant 0 : index
    %c0_0 = arith.constant 0 : index
    %0 = vector.load %arg1[%c0, %c0_0] : memref<128x128xbf16, #tpu.memory_space<vmem>>, vector<128x128xbf16>
    %1 = arith.extf %0 : vector<128x128xbf16> to vector<128x128xf32>
    %c0_1 = arith.constant 0 : index
    %c0_2 = arith.constant 0 : index
    %2 = vector.load %arg2[%c0_1, %c0_2] : memref<1x128xf32, #tpu.memory_space<vmem>>, vector<1x128xf32>
    %3 = vector.broadcast %2 : vector<1x128xf32> to vector<128x128xf32>
    %4 = arith.mulf %1, %3 : vector<128x128xf32>
    %c0_3 = arith.constant 0 : index
    %c0_4 = arith.constant 0 : index
    %5 = vector.load %arg3[%c0_3, %c0_4] : memref<1x128xf32, #tpu.memory_space<vmem>>, vector<1x128xf32>
    %6 = vector.broadcast %5 : vector<1x128xf32> to vector<128x128xf32>
    %7 = arith.addf %4, %6 : vector<128x128xf32>
    %c0_5 = arith.constant 0 : index
    %c0_6 = arith.constant 0 : index
    %8 = vector.load %arg4[%c0_5, %c0_6] : memref<128x128xbf16, #tpu.memory_space<vmem>>, vector<128x128xbf16>
    %9 = arith.extf %8 : vector<128x128xbf16> to vector<128x128xf32>
    %c0_7 = arith.constant 0 : index
    %c0_8 = arith.constant 0 : index
    %10 = vector.load %arg5[%c0_7, %c0_8] : memref<1x128xf32, #tpu.memory_space<vmem>>, vector<1x128xf32>
    %11 = vector.broadcast %10 : vector<1x128xf32> to vector<128x128xf32>
    %12 = arith.mulf %9, %11 : vector<128x128xf32>
    %13 = arith.addf %7, %12 : vector<128x128xf32>
    %c0_9 = arith.constant 0 : index
    %c0_10 = arith.constant 0 : index
    %14 = vector.load %arg6[%c0_9, %c0_10] : memref<1x128xf32, #tpu.memory_space<vmem>>, vector<1x128xf32>
    %15 = vector.broadcast %14 : vector<1x128xf32> to vector<128x128xf32>
    %16 = arith.addf %13, %15 : vector<128x128xf32>
    %cst = arith.constant 0.000000e+00 : f32
    %17 = vector.broadcast %cst : f32 to vector<128x128xf32>
    %18 = arith.maximumf %16, %17 : vector<128x128xf32>
    %19 = arith.truncf %18 : vector<128x128xf32> to vector<128x128xbf16>
    %c0_11 = arith.constant 0 : index
    %c0_12 = arith.constant 0 : index
    %20 = vector.load %arg7[%c0_11, %c0_12] : memref<128x128xbf16, #tpu.memory_space<vmem>>, vector<128x128xbf16>
    tpu.vector_store %arg7[%c0_11, %c0_12], %19 {strides = array<i32>} : memref<128x128xbf16, #tpu.memory_space<vmem>>, vector<128x128xbf16>,
    return
  }
  func.func @transform_0(%arg0: i32) -> (i32, i32) {
    %c0_i32 = arith.constant 0 : i32
    %c0_i32_0 = arith.constant 0 : i32
    return %arg0, %c0_i32 : i32, i32
  }
  func.func @transform_1(%arg0: i32) -> (i32, i32) {
    %c0_i32 = arith.constant 0 : i32
    %c0_i32_0 = arith.constant 0 : i32
    %c0_i32_1 = arith.constant 0 : i32
    return %c0_i32, %c0_i32_0 : i32, i32
  }
  func.func @transform_2(%arg0: i32) -> (i32, i32) {
    %c0_i32 = arith.constant 0 : i32
    %c0_i32_0 = arith.constant 0 : i32
    %c0_i32_1 = arith.constant 0 : i32
    return %c0_i32, %c0_i32_0 : i32, i32
  }
  func.func @transform_3(%arg0: i32) -> (i32, i32) {
    %c0_i32 = arith.constant 0 : i32
    %c0_i32_0 = arith.constant 0 : i32
    return %arg0, %c0_i32 : i32, i32
  }
  func.func @transform_4(%arg0: i32) -> (i32, i32) {
    %c0_i32 = arith.constant 0 : i32
    %c0_i32_0 = arith.constant 0 : i32
    %c0_i32_1 = arith.constant 0 : i32
    return %c0_i32, %c0_i32_0 : i32, i32
  }
  func.func @transform_5(%arg0: i32) -> (i32, i32) {
    %c0_i32 = arith.constant 0 : i32
    %c0_i32_0 = arith.constant 0 : i32
    %c0_i32_1 = arith.constant 0 : i32
    return %c0_i32, %c0_i32_0 : i32, i32
  }
  func.func @transform_6(%arg0: i32) -> (i32, i32) {
    %c0_i32 = arith.constant 0 : i32
    %c0_i32_0 = arith.constant 0 : i32
    return %arg0, %c0_i32 : i32, i32
  }
}

</mosaic_0001>

<llo_original>
// kernel: a_call__.5
$region0: #{a_call__.5}
  #allocation0 [shape = 'u32[]', space=smem, size = 0x4, offset = 0x4, fixed_abs, tag = 'smem constant byte address 0x4 - core index']
  #allocation1 [shape = 'u32[144,128]{1,0:T(1,128)}', space=vmem, size = 0x12000, scoped, tag = 'internal scratch']
  %s0 = inlined_call_operand.vmem [shape: bf16[128,128], index: 0, kind: input, shape index: {}]
  %s1 = inlined_call_operand.vmem [shape: f32[1,128], index: 1, kind: input, shape index: {}]
  %s2 = inlined_call_operand.vmem [shape: f32[1,128], index: 2, kind: input, shape index: {}]
  %s3 = inlined_call_operand.vmem [shape: bf16[128,128], index: 3, kind: output, shape index: {}]
  %s4 = sld [smem:[#allocation0]]
  $region22: #{a_call__.5} parent=0
    _
  %s6 = ssub.s32 1, %s4
  %s7 = scalar_select 0, %s6, %s4
  // Predicated region
  $region2: #{a_call__.5} parent=0 // pred_check
    _
  $region3: #{a_call__.5} parent=0 // pred_check_branch
    %9 = sbr.rel (0) target = $region5
  $region4: #{a_call__.5} parent=0 // pred_region
    _
  $region5: #{a_call__.5} parent=0 // pred_fallthru
    _
  // Predicated region
  $region6: #{a_call__.5} parent=0 // pred_check
    _
  $region7: #{a_call__.5} parent=0 // pred_check_branch
    %11 = sbr.rel (0) target = $region9
  $region8: #{a_call__.5} parent=0 // pred_region
    _
  $region9: #{a_call__.5} parent=0 // pred_fallthru
    _
  // Predicated region
  $region10: #{a_call__.5} parent=0 // pred_check
    _
  $region11: #{a_call__.5} parent=0 // pred_check_branch
    %13 = sbr.rel (0) target = $region13
  $region12: #{a_call__.5} parent=0 // pred_region
    _
  $region13: #{a_call__.5} parent=0 // pred_fallthru
    _
  %v14 = vld [vmem:[%s0] sm:$0xf]
  %v15 = vld [vmem:[%s0 + $0x4] sm:$0xf]
  %v16 = vld [vmem:[%s0 + $0x8] sm:$0xf]
  %v17 = vld [vmem:[%s0 + $0xc] sm:$0xf]
  %v18 = vld [vmem:[%s0 + $0x10] sm:$0xf]
  %v19 = vld [vmem:[%s0 + $0x14] sm:$0xf]
  %v20 = vld [vmem:[%s0 + $0x18] sm:$0xf]
  %v21 = vld [vmem:[%s0 + $0x1c] sm:$0xf]
  %v22 = vld [vmem:[%s0 + $0x20] sm:$0xf]
  %v23 = vld [vmem:[%s0 + $0x24] sm:$0xf]
  %v24 = vld [vmem:[%s0 + $0x28] sm:$0xf]
  %v25 = vld [vmem:[%s0 + $0x2c] sm:$0xf]
  %v26 = vld [vmem:[%s0 + $0x30] sm:$0xf]
  %v27 = vld [vmem:[%s0 + $0x34] sm:$0xf]
  %v28 = vld [vmem:[%s0 + $0x38] sm:$0xf]
  %v29 = vld [vmem:[%s0 + $0x3c] sm:$0xf]
  %v30 = vunpack.c.l.bf16 %v14
  %v31 = vunpack.c.l.bf16 %v15
  %v32 = vunpack.c.l.bf16 %v16
  %v33 = vunpack.c.l.bf16 %v17
  %v34 = vunpack.c.l.bf16 %v18
  %v35 = vunpack.c.l.bf16 %v19
  %v36 = vunpack.c.l.bf16 %v20
  %v37 = vunpack.c.l.bf16 %v21
  %v38 = vunpack.c.l.bf16 %v22
  %v39 = vunpack.c.l.bf16 %v23
  %v40 = vunpack.c.l.bf16 %v24
  %v41 = vunpack.c.l.bf16 %v25
  %v42 = vunpack.c.l.bf16 %v26
  %v43 = vunpack.c.l.bf16 %v27
  %v44 = vunpack.c.l.bf16 %v28
  %v45 = vunpack.c.l.bf16 %v29
  %v46 = vld [vmem:[%s1] sm:$0x1]
  %v48 = vlaneseq
  %v49 = vshrl.u32 %v48, 7
  %v50 = vsub.s32 0, %v49
  %v51 = vrot.slane %v46, %v50
  %v53 = vmul.f32 %v30, %v51
  %v54 = vmul.f32 %v31, %v51
  %v55 = vmul.f32 %v32, %v51
  %v56 = vmul.f32 %v33, %v51
  %v57 = vmul.f32 %v34, %v51
  %v58 = vmul.f32 %v35, %v51
  %v59 = vmul.f32 %v36, %v51
  %v60 = vmul.f32 %v37, %v51
  %v61 = vmul.f32 %v38, %v51
  %v62 = vmul.f32 %v39, %v51
  %v63 = vmul.f32 %v40, %v51
  %v64 = vmul.f32 %v41, %v51
  %v65 = vmul.f32 %v42, %v51
  %v66 = vmul.f32 %v43, %v51
  %v67 = vmul.f32 %v44, %v51
  %v68 = vmul.f32 %v45, %v51
  %v69 = vld [vmem:[%s2] sm:$0x1]
  %v71 = vlaneseq
  %v72 = vshrl.u32 %v71, 7
  %v73 = vsub.s32 0, %v72
  %v74 = vrot.slane %v69, %v73
  %v76 = vadd.f32 %v53, %v74
  %v77 = vadd.f32 %v54, %v74
  %v78 = vadd.f32 %v55, %v74
  %v79 = vadd.f32 %v56, %v74
  %v80 = vadd.f32 %v57, %v74
  %v81 = vadd.f32 %v58, %v74
  %v82 = vadd.f32 %v59, %v74
  %v83 = vadd.f32 %v60, %v74
  %v84 = vadd.f32 %v61, %v74
  %v85 = vadd.f32 %v62, %v74
  %v86 = vadd.f32 %v63, %v74
  %v87 = vadd.f32 %v64, %v74
  %v88 = vadd.f32 %v65, %v74
  %v89 = vadd.f32 %v66, %v74
  %v90 = vadd.f32 %v67, %v74
  %v91 = vadd.f32 %v68, %v74
  %v92 = vmax.f32 %v76, 0.0
  %v93 = vmax.f32 %v77, 0.0
  %v94 = vmax.f32 %v78, 0.0
  %v95 = vmax.f32 %v79, 0.0
  %v96 = vmax.f32 %v80, 0.0
  %v97 = vmax.f32 %v81, 0.0
  %v98 = vmax.f32 %v82, 0.0
  %v99 = vmax.f32 %v83, 0.0
  %v100 = vmax.f32 %v84, 0.0
  %v101 = vmax.f32 %v85, 0.0
  %v102 = vmax.f32 %v86, 0.0
  %v103 = vmax.f32 %v87, 0.0
  %v104 = vmax.f32 %v88, 0.0
  %v105 = vmax.f32 %v89, 0.0
  %v106 = vmax.f32 %v90, 0.0
  %v107 = vmax.f32 %v91, 0.0
  %v108 = vpack.c.bf16 %v93, %v92
  %v109 = vpack.c.bf16 %v95, %v94
  %v110 = vpack.c.bf16 %v97, %v96
  %v111 = vpack.c.bf16 %v99, %v98
  %v112 = vpack.c.bf16 %v101, %v100
  %v113 = vpack.c.bf16 %v103, %v102
  %v114 = vpack.c.bf16 %v105, %v104
  %v115 = vpack.c.bf16 %v107, %v106
  %v124 = vunpack.c.l.b16 %v108
  %v125 = vunpack.c.h.b16 %v108
  %v126 = vunpack.c.l.b16 %v109
  %v127 = vunpack.c.h.b16 %v109
  %v128 = vunpack.c.l.b16 %v110
  %v129 = vunpack.c.h.b16 %v110
  %v130 = vunpack.c.l.b16 %v111
  %v131 = vunpack.c.h.b16 %v111
  %v132 = vunpack.c.l.b16 %v112
  %v133 = vunpack.c.h.b16 %v112
  %v134 = vunpack.c.l.b16 %v113
  %v135 = vunpack.c.h.b16 %v113
  %v136 = vunpack.c.l.b16 %v114
  %v137 = vunpack.c.h.b16 %v114
  %v138 = vunpack.c.l.b16 %v115
  %v139 = vunpack.c.h.b16 %v115
  %v140 = vpack.c.b16 %v124, %v124
  %v141 = vpack.c.b16 %v125, %v125
  %v142 = vpack.c.b16 %v126, %v126
  %v143 = vpack.c.b16 %v127, %v127
  %v144 = vpack.c.b16 %v128, %v128
  %v145 = vpack.c.b16 %v129, %v129
  %v146 = vpack.c.b16 %v130, %v130
  %v147 = vpack.c.b16 %v131, %v131
  %v148 = vpack.c.b16 %v132, %v132
  %v149 = vpack.c.b16 %v133, %v133
  %v150 = vpack.c.b16 %v134, %v134
  %v151 = vpack.c.b16 %v135, %v135
  %v152 = vpack.c.b16 %v136, %v136
  %v153 = vpack.c.b16 %v137, %v137
  %v154 = vpack.c.b16 %v138, %v138
  %v155 = vpack.c.b16 %v139, %v139
  %172 = vst [vmem:[%s3] sm:$0xf] %v140
  %173 = vst [vmem:[%s3 + $0x4] sm:$0xf] %v141
  %174 = vst [vmem:[%s3 + $0x8] sm:$0xf] %v142
  %175 = vst [vmem:[%s3 + $0xc] sm:$0xf] %v143
  %176 = vst [vmem:[%s3 + $0x10] sm:$0xf] %v144
  %177 = vst [vmem:[%s3 + $0x14] sm:$0xf] %v145
  %178 = vst [vmem:[%s3 + $0x18] sm:$0xf] %v146
  %179 = vst [vmem:[%s3 + $0x1c] sm:$0xf] %v147
  %180 = vst [vmem:[%s3 + $0x20] sm:$0xf] %v148
  %181 = vst [vmem:[%s3 + $0x24] sm:$0xf] %v149
  %182 = vst [vmem:[%s3 + $0x28] sm:$0xf] %v150
  %183 = vst [vmem:[%s3 + $0x2c] sm:$0xf] %v151
  %184 = vst [vmem:[%s3 + $0x30] sm:$0xf] %v152
  %185 = vst [vmem:[%s3 + $0x34] sm:$0xf] %v153
  %186 = vst [vmem:[%s3 + $0x38] sm:$0xf] %v154
  %187 = vst [vmem:[%s3 + $0x3c] sm:$0xf] %v155
  // Predicated region
  $region14: #{a_call__.5} parent=0 // pred_check
    _
  $region15: #{a_call__.5} parent=0 // pred_check_branch
    %189 = sbr.rel (0) target = $region17
  $region16: #{a_call__.5} parent=0 // pred_region
    _
  $region17: #{a_call__.5} parent=0 // pred_fallthru
    _
  // Predicated region
  $region18: #{a_call__.5} parent=0 // pred_check
    _
  $region19: #{a_call__.5} parent=0 // pred_check_branch
    %191 = sbr.rel (0) target = $region21
  $region20: #{a_call__.5} parent=0 // pred_region
    _
  $region21: #{a_call__.5} parent=0 // pred_fallthru
    _

// kernel: a_call__.4
$region0: #{a_call__.4}
  #allocation0 [shape = 'u32[]', space=smem, size = 0x4, offset = 0x4, fixed_abs, tag = 'smem constant byte address 0x4 - core index']
  #allocation1 [shape = 'u32[144,128]{1,0:T(1,128)}', space=vmem, size = 0x12000, scoped, tag = 'internal scratch']
  %s0 = inlined_call_operand.vmem [shape: bf16[128,36], index: 0, kind: input, shape index: {}]
  %s1 = inlined_call_operand.vmem [shape: bf16[36,128], index: 1, kind: input, shape index: {}]
  %s2 = inlined_call_operand.vmem [shape: bf16[128,128], index: 2, kind: output, shape index: {0}]
  %s3 = inlined_call_operand.vmem [shape: f32[1,1,128], index: 3, kind: output, shape index: {1}]
  %s4 = inlined_call_operand.vmem [shape: f32[1,1,128], index: 4, kind: output, shape index: {2}]
  %5 = xla_tuple %s2, %s3, %s4
  %s6 = sld [smem:[#allocation0]]
  $region34: #{a_call__.4} parent=0
    _
  %s8 = ssub.s32 1, %s6
  %s9 = scalar_select 0, %s8, %s6
  // Predicated region
  $region2: #{a_call__.4} parent=0 // pred_check
    _
  $region3: #{a_call__.4} parent=0 // pred_check_branch
    %11 = sbr.rel (0) target = $region5
  $region4: #{a_call__.4} parent=0 // pred_region
    _
  $region5: #{a_call__.4} parent=0 // pred_fallthru
    _
  // Predicated region
  $region6: #{a_call__.4} parent=0 // pred_check
    _
  $region7: #{a_call__.4} parent=0 // pred_check_branch
    %13 = sbr.rel (0) target = $region9
  $region8: #{a_call__.4} parent=0 // pred_region
    _
  $region9: #{a_call__.4} parent=0 // pred_fallthru
    _
  %v15 = vld [vmem:[%s0] sm:$0xf]
  %v16 = vld [vmem:[%s0 + $0x4] sm:$0xf]
  %v17 = vld [vmem:[%s0 + $0x8] sm:$0xf]
  %v18 = vld [vmem:[%s0 + $0xc] sm:$0xf]
  %v19 = vld [vmem:[%s0 + $0x10] sm:$0xf]
  %v20 = vld [vmem:[%s0 + $0x14] sm:$0xf]
  %v21 = vld [vmem:[%s0 + $0x18] sm:$0xf]
  %v22 = vld [vmem:[%s0 + $0x1c] sm:$0xf]
  %v23 = vld [vmem:[%s0 + $0x20] sm:$0xf]
  %v24 = vld [vmem:[%s0 + $0x24] sm:$0xf]
  %v25 = vld [vmem:[%s0 + $0x28] sm:$0xf]
  %v26 = vld [vmem:[%s0 + $0x2c] sm:$0xf]
  %v27 = vld [vmem:[%s0 + $0x30] sm:$0xf]
  %v28 = vld [vmem:[%s0 + $0x34] sm:$0xf]
  %v29 = vld [vmem:[%s0 + $0x38] sm:$0xf]
  %v30 = vld [vmem:[%s0 + $0x3c] sm:$0xf]
  %v31 = vld [vmem:[%s1] sm:$0xf]
  %v32 = vld [vmem:[%s1 + $0x4] sm:$0xf]
  %v33 = vld [vmem:[%s1 + $0x8] sm:$0xf]
  %v34 = vld [vmem:[%s1 + $0xc] sm:$0xf]
  %v35 = vld [vmem:[%s1 + $0x10] sm:$0x3]
  %v52 = vunpack.c.l.b16 %v15
  %v53 = vunpack.c.l.b16 %v16
  %v54 = vunpack.c.l.b16 %v17
  %v55 = vunpack.c.l.b16 %v18
  %v56 = vunpack.c.l.b16 %v19
  %v57 = vunpack.c.l.b16 %v20
  %v58 = vunpack.c.l.b16 %v21
  %v59 = vunpack.c.l.b16 %v22
  %v60 = vunpack.c.l.b16 %v23
  %v61 = vunpack.c.l.b16 %v24
  %v62 = vunpack.c.l.b16 %v25
  %v63 = vunpack.c.l.b16 %v26
  %v64 = vunpack.c.l.b16 %v27
  %v65 = vunpack.c.l.b16 %v28
  %v66 = vunpack.c.l.b16 %v29
  %v67 = vunpack.c.l.b16 %v30
  %v68 = vpack.c.b16 %v53, %v52
  %v69 = vpack.c.b16 %v55, %v54
  %v70 = vpack.c.b16 %v57, %v56
  %v71 = vpack.c.b16 %v59, %v58
  %v72 = vpack.c.b16 %v61, %v60
  %v73 = vpack.c.b16 %v63, %v62
  %v74 = vpack.c.b16 %v65, %v64
  %v75 = vpack.c.b16 %v67, %v66
  %v81 = vunpack.c.l.b16 %v31
  %v82 = vunpack.c.l.b16 %v32
  %v83 = vunpack.c.l.b16 %v33
  %v84 = vunpack.c.l.b16 %v34
  %v85 = vunpack.c.l.b16 %v35
  %v86 = vpack.c.b16 %v82, %v81
  %v87 = vpack.c.b16 %v84, %v83
  %v88 = vpack.c.b16 %v85, %v85
  %vm91 = vcmask 293888
  %v93 = vsel %vm91, %v68, 0
  %v96 = vsel %vm91, %v69, 0
  %v99 = vsel %vm91, %v70, 0
  %v102 = vsel %vm91, %v71, 0
  %v105 = vsel %vm91, %v72, 0
  %v108 = vsel %vm91, %v73, 0
  %v111 = vsel %vm91, %v74, 0
  %v114 = vsel %vm91, %v75, 0
  %vm116 = vcmask 1041408
  %v118 = vsel %vm116, %v88, 0
  %120 = vmatprep.subr.bf16.mxu0 0
  %121 = vmatpush1.bf16.msra.mxu0 0
  %122 = vmatprep.subr.bf16.mxu0 0
  %123 = vmatpush1.bf16.msra.mxu0 0
  %124 = vmatprep.subr.bf16.mxu0 0
  %125 = vmatpush1.bf16.msra.mxu0 0
  %126 = vmatprep.subr.bf16.mxu0 0
  %127 = vmatpush1.bf16.msra.mxu0 0
  %128 = vmatprep.subr.bf16.mxu0 0
  %129 = vmatpush1.bf16.msra.mxu0 0
  %130 = vmatprep.subr.bf16.mxu0 0
  %131 = vmatpush1.bf16.msra.mxu0 %v118
  %132 = vmatprep.subr.bf16.mxu0 0
  %133 = vmatpush1.bf16.msra.mxu0 %v87
  %134 = vmatprep.subr.bf16.mxu0 0
  %135 = vmatpush1.bf16.msra.mxu0 %v86
  %136 = vmatprep.subr.bf16.mxu0 0
  %137 = vmatpush2.bf16.msra.mxu0 0
  %138 = vmatprep.subr.bf16.mxu0 0
  %139 = vmatpush2.bf16.msra.mxu0 0
  %140 = vmatprep.subr.bf16.mxu0 0
  %141 = vmatpush2.bf16.msra.mxu0 0
  %142 = vmatprep.subr.bf16.mxu0 0
  %143 = vmatpush2.bf16.msra.mxu0 0
  %144 = vmatprep.subr.bf16.mxu0 0
  %145 = vmatpush2.bf16.msra.mxu0 0
  %146 = vmatprep.subr.bf16.mxu0 0
  %147 = vmatpush2.bf16.msra.mxu0 0
  %148 = vmatprep.subr.bf16.mxu0 0
  %149 = vmatpush2.bf16.msra.mxu0 0
  %150 = vmatprep.subr.bf16.mxu0 0
  %151 = vmatpush2.bf16.msra.mxu0 0
  %152 = vmatprep.mubr.bf16.mxu0 0
  %153 = vmatmul.mubr.bf16.gmra.mxu0 %v93
  %v154 = vpop.f32.mrf.mxu0
  %v155 = vadd.f32 0.0, %v154
  %v156 = vpop.f32.mrf.mxu0
  %v157 = vpop.f32.mrf.mxu0
  %v158 = vadd.f32 0.0, %v157
  %v159 = vpop.f32.mrf.mxu0
  %160 = vmatprep.mubr.bf16.mxu0 0
  %161 = vmatmul.mubr.bf16.gmra.mxu0 %v96
  %v162 = vpop.f32.mrf.mxu0
  %v163 = vadd.f32 0.0, %v162
  %v164 = vpop.f32.mrf.mxu0
  %v165 = vpop.f32.mrf.mxu0
  %v166 = vadd.f32 0.0, %v165
  %v167 = vpop.f32.mrf.mxu0
  %168 = vmatprep.mubr.bf16.mxu0 0
  %169 = vmatmul.mubr.bf16.gmra.mxu0 %v99
  %v170 = vpop.f32.mrf.mxu0
  %v171 = vadd.f32 0.0, %v170
  %v172 = vpop.f32.mrf.mxu0
  %v173 = vpop.f32.mrf.mxu0
  %v174 = vadd.f32 0.0, %v173
  %v175 = vpop.f32.mrf.mxu0
  %176 = vmatprep.mubr.bf16.mxu0 0
  %177 = vmatmul.mubr.bf16.gmra.mxu0 %v102
  %v178 = vpop.f32.mrf.mxu0
  %v179 = vadd.f32 0.0, %v178
  %v180 = vpop.f32.mrf.mxu0
  %v181 = vpop.f32.mrf.mxu0
  %v182 = vadd.f32 0.0, %v181
  %v183 = vpop.f32.mrf.mxu0
  %184 = vmatprep.mubr.bf16.mxu0 0
  %185 = vmatmul.mubr.bf16.gmra.mxu0 %v105
  %v186 = vpop.f32.mrf.mxu0
  %v187 = vadd.f32 0.0, %v186
  %v188 = vpop.f32.mrf.mxu0
  %v189 = vpop.f32.mrf.mxu0
  %v190 = vadd.f32 0.0, %v189
  %v191 = vpop.f32.mrf.mxu0
  %192 = vmatprep.mubr.bf16.mxu0 0
  %193 = vmatmul.mubr.bf16.gmra.mxu0 %v108
  %v194 = vpop.f32.mrf.mxu0
  %v195 = vadd.f32 0.0, %v194
  %v196 = vpop.f32.mrf.mxu0
  %v197 = vpop.f32.mrf.mxu0
  %v198 = vadd.f32 0.0, %v197
  %v199 = vpop.f32.mrf.mxu0
  %200 = vmatprep.mubr.bf16.mxu0 0
  %201 = vmatmul.mubr.bf16.gmra.mxu0 %v111
  %v202 = vpop.f32.mrf.mxu0
  %v203 = vadd.f32 0.0, %v202
  %v204 = vpop.f32.mrf.mxu0
  %v205 = vpop.f32.mrf.mxu0
  %v206 = vadd.f32 0.0, %v205
  %v207 = vpop.f32.mrf.mxu0
  %208 = vmatprep.mubr.bf16.mxu0 0
  %209 = vmatmul.mubr.bf16.gmra.mxu0 %v114
  %v210 = vpop.f32.mrf.mxu0
  %v211 = vadd.f32 0.0, %v210
  %v212 = vpop.f32.mrf.mxu0
  %v213 = vpop.f32.mrf.mxu0
  %v214 = vadd.f32 0.0, %v213
  %v215 = vpop.f32.mrf.mxu0
  %216 = vdwg.mxu0
  %v217 = vpack.c.bf16 %v158, %v155
  %v218 = vpack.c.bf16 %v166, %v163
  %v219 = vpack.c.bf16 %v174, %v171
  %v220 = vpack.c.bf16 %v182, %v179
  %v221 = vpack.c.bf16 %v190, %v187
  %v222 = vpack.c.bf16 %v198, %v195
  %v223 = vpack.c.bf16 %v206, %v203
  %v224 = vpack.c.bf16 %v214, %v211
  %v233 = vunpack.c.l.b16 %v217
  %v234 = vunpack.c.h.b16 %v217
  %v235 = vunpack.c.l.b16 %v218
  %v236 = vunpack.c.h.b16 %v218
  %v237 = vunpack.c.l.b16 %v219
  %v238 = vunpack.c.h.b16 %v219
  %v239 = vunpack.c.l.b16 %v220
  %v240 = vunpack.c.h.b16 %v220
  %v241 = vunpack.c.l.b16 %v221
  %v242 = vunpack.c.h.b16 %v221
  %v243 = vunpack.c.l.b16 %v222
  %v244 = vunpack.c.h.b16 %v222
  %v245 = vunpack.c.l.b16 %v223
  %v246 = vunpack.c.h.b16 %v223
  %v247 = vunpack.c.l.b16 %v224
  %v248 = vunpack.c.h.b16 %v224
  %v249 = vpack.c.b16 %v233, %v233
  %v250 = vpack.c.b16 %v234, %v234
  %v251 = vpack.c.b16 %v235, %v235
  %v252 = vpack.c.b16 %v236, %v236
  %v253 = vpack.c.b16 %v237, %v237
  %v254 = vpack.c.b16 %v238, %v238
  %v255 = vpack.c.b16 %v239, %v239
  %v256 = vpack.c.b16 %v240, %v240
  %v257 = vpack.c.b16 %v241, %v241
  %v258 = vpack.c.b16 %v242, %v242
  %v259 = vpack.c.b16 %v243, %v243
  %v260 = vpack.c.b16 %v244, %v244
  %v261 = vpack.c.b16 %v245, %v245
  %v262 = vpack.c.b16 %v246, %v246
  %v263 = vpack.c.b16 %v247, %v247
  %v264 = vpack.c.b16 %v248, %v248
  %281 = vst [vmem:[%s2] sm:$0xf] %v249
  %282 = vst [vmem:[%s2 + $0x4] sm:$0xf] %v250
  %283 = vst [vmem:[%s2 + $0x8] sm:$0xf] %v251
  %284 = vst [vmem:[%s2 + $0xc] sm:$0xf] %v252
  %285 = vst [vmem:[%s2 + $0x10] sm:$0xf] %v253
  %286 = vst [vmem:[%s2 + $0x14] sm:$0xf] %v254
  %287 = vst [vmem:[%s2 + $0x18] sm:$0xf] %v255
  %288 = vst [vmem:[%s2 + $0x1c] sm:$0xf] %v256
  %289 = vst [vmem:[%s2 + $0x20] sm:$0xf] %v257
  %290 = vst [vmem:[%s2 + $0x24] sm:$0xf] %v258
  %291 = vst [vmem:[%s2 + $0x28] sm:$0xf] %v259
  %292 = vst [vmem:[%s2 + $0x2c] sm:$0xf] %v260
  %293 = vst [vmem:[%s2 + $0x30] sm:$0xf] %v261
  %294 = vst [vmem:[%s2 + $0x34] sm:$0xf] %v262
  %295 = vst [vmem:[%s2 + $0x38] sm:$0xf] %v263
  %296 = vst [vmem:[%s2 + $0x3c] sm:$0xf] %v264
  %v297 = vadd.f32 %v155, %v158
  %v298 = vadd.f32 %v297, %v163
  %v299 = vadd.f32 %v298, %v166
  %v300 = vadd.f32 %v299, %v171
  %v301 = vadd.f32 %v300, %v174
  %v302 = vadd.f32 %v301, %v179
  %v303 = vadd.f32 %v302, %v182
  %v304 = vadd.f32 %v303, %v187
  %v305 = vadd.f32 %v304, %v190
  %v306 = vadd.f32 %v305, %v195
  %v307 = vadd.f32 %v306, %v198
  %v308 = vadd.f32 %v307, %v203
  %v309 = vadd.f32 %v308, %v206
  %v310 = vadd.f32 %v309, %v211
  %v311 = vadd.f32 %v310, %v214
  %v312 = vrot.slane %v311, 4
  %v313 = vadd.f32 %v311, %v312
  %v314 = vrot.slane %v313, 2
  %v315 = vadd.f32 %v313, %v314
  %v316 = vrot.slane %v315, 1
  %v317 = vadd.f32 %v315, %v316
  %318 = vst [vmem:[%s3] sm:$0x1] %v317
  %v319 = vmul.f32 %v155, %v155
  %v320 = vmul.f32 %v158, %v158
  %v321 = vmul.f32 %v163, %v163
  %v322 = vmul.f32 %v166, %v166
  %v323 = vmul.f32 %v171, %v171
  %v324 = vmul.f32 %v174, %v174
  %v325 = vmul.f32 %v179, %v179
  %v326 = vmul.f32 %v182, %v182
  %v327 = vmul.f32 %v187, %v187
  %v328 = vmul.f32 %v190, %v190
  %v329 = vmul.f32 %v195, %v195
  %v330 = vmul.f32 %v198, %v198
  %v331 = vmul.f32 %v203, %v203
  %v332 = vmul.f32 %v206, %v206
  %v333 = vmul.f32 %v211, %v211
  %v334 = vmul.f32 %v214, %v214
  %v335 = vadd.f32 %v319, %v320
  %v336 = vadd.f32 %v335, %v321
  %v337 = vadd.f32 %v336, %v322
  %v338 = vadd.f32 %v337, %v323
  %v339 = vadd.f32 %v338, %v324
  %v340 = vadd.f32 %v339, %v325
  %v341 = vadd.f32 %v340, %v326
  %v342 = vadd.f32 %v341, %v327
  %v343 = vadd.f32 %v342, %v328
  %v344 = vadd.f32 %v343, %v329
  %v345 = vadd.f32 %v344, %v330
  %v346 = vadd.f32 %v345, %v331
  %v347 = vadd.f32 %v346, %v332
  %v348 = vadd.f32 %v347, %v333
  %v349 = vadd.f32 %v348, %v334
  %v350 = vrot.slane %v349, 4
  %v351 = vadd.f32 %v349, %v350
  %v352 = vrot.slane %v351, 2
  %v353 = vadd.f32 %v351, %v352
  %v354 = vrot.slane %v353, 1
  %v355 = vadd.f32 %v353, %v354
  %356 = vst [vmem:[%s4] sm:$0x1] %v355
  // Predicated region
  $region10: #{a_call__.4} parent=0 // pred_check
    _
  $region11: #{a_call__.4} parent=0 // pred_check_branch
    %358 = sbr.rel (0) target = $region13
  $region12: #{a_call__.4} parent=0 // pred_region
    _
  $region13: #{a_call__.4} parent=0 // pred_fallthru
    _
  // Predicated region
  $region14: #{a_call__.4} parent=0 // pred_check
    _
  $region15: #{a_call__.4} parent=0 // pred_check_branch
    %360 = sbr.rel (0) target = $region17
  $region16: #{a_call__.4} parent=0 // pred_region
    _
  $region17: #{a_call__.4} parent=0 // pred_fallthru
    _
  // Predicated region
  $region18: #{a_call__.4} parent=0 // pred_check
    _
  $region19: #{a_call__.4} parent=0 // pred_check_branch
    %362 = sbr.rel (0) target = $region21
  $region20: #{a_call__.4} parent=0 // pred_region
    _
  $region21: #{a_call__.4} parent=0 // pred_fallthru
    _
  // Predicated region
  $region22: #{a_call__.4} parent=0 // pred_check
    _
  $region23: #{a_call__.4} parent=0 // pred_check_branch
    %364 = sbr.rel (0) target = $region25
  $region24: #{a_call__.4} parent=0 // pred_region
    _
  $region25: #{a_call__.4} parent=0 // pred_fallthru
    _
  // Predicated region
  $region26: #{a_call__.4} parent=0 // pred_check
    _
  $region27: #{a_call__.4} parent=0 // pred_check_branch
    %366 = sbr.rel (0) target = $region29
  $region28: #{a_call__.4} parent=0 // pred_region
    _
  $region29: #{a_call__.4} parent=0 // pred_fallthru
    _
  // Predicated region
  $region30: #{a_call__.4} parent=0 // pred_check
    _
  $region31: #{a_call__.4} parent=0 // pred_check_branch
    %368 = sbr.rel (0) target = $region33
  $region32: #{a_call__.4} parent=0 // pred_region
    _
  $region33: #{a_call__.4} parent=0 // pred_fallthru
    _

// kernel: a_call__.6
$region0: #{a_call__.6}
  #allocation0 [shape = 'u32[]', space=smem, size = 0x4, offset = 0x4, fixed_abs, tag = 'smem constant byte address 0x4 - core index']
  #allocation1 [shape = 'u32[144,128]{1,0:T(1,128)}', space=vmem, size = 0x12000, scoped, tag = 'internal scratch']
  %s0 = inlined_call_operand.vmem [shape: bf16[128,72], index: 0, kind: input, shape index: {}]
  %s1 = inlined_call_operand.vmem [shape: bf16[72,128], index: 1, kind: input, shape index: {}]
  %s2 = inlined_call_operand.vmem [shape: bf16[128,4], index: 2, kind: input, shape index: {}]
  %s3 = inlined_call_operand.vmem [shape: bf16[4,128], index: 3, kind: input, shape index: {}]
  %s4 = inlined_call_operand.vmem [shape: bf16[128,128], index: 4, kind: output, shape index: {0}]
  %s5 = inlined_call_operand.vmem [shape: f32[1,1,128], index: 5, kind: output, shape index: {1}]
  %s6 = inlined_call_operand.vmem [shape: f32[1,1,128], index: 6, kind: output, shape index: {2}]
  %s7 = inlined_call_operand.vmem [shape: bf16[128,128], index: 7, kind: output, shape index: {3}]
  %s8 = inlined_call_operand.vmem [shape: f32[1,1,128], index: 8, kind: output, shape index: {4}]
  %s9 = inlined_call_operand.vmem [shape: f32[1,1,128], index: 9, kind: output, shape index: {5}]
  %10 = xla_tuple %s4, %s5, %s6, %s7, %s8, %s9
  %s11 = sld [smem:[#allocation0]]
  $region66: #{a_call__.6} parent=0
    _
  %s13 = ssub.s32 1, %s11
  %s14 = scalar_select 0, %s13, %s11
  // Predicated region
  $region2: #{a_call__.6} parent=0 // pred_check
    _
  $region3: #{a_call__.6} parent=0 // pred_check_branch
    %16 = sbr.rel (0) target = $region5
  $region4: #{a_call__.6} parent=0 // pred_region
    _
  $region5: #{a_call__.6} parent=0 // pred_fallthru
    _
  // Predicated region
  $region6: #{a_call__.6} parent=0 // pred_check
    _
  $region7: #{a_call__.6} parent=0 // pred_check_branch
    %18 = sbr.rel (0) target = $region9
  $region8: #{a_call__.6} parent=0 // pred_region
    _
  $region9: #{a_call__.6} parent=0 // pred_fallthru
    _
  // Predicated region
  $region10: #{a_call__.6} parent=0 // pred_check
    _
  $region11: #{a_call__.6} parent=0 // pred_check_branch
    %20 = sbr.rel (0) target = $region13
  $region12: #{a_call__.6} parent=0 // pred_region
    _
  $region13: #{a_call__.6} parent=0 // pred_fallthru
    _
  // Predicated region
  $region14: #{a_call__.6} parent=0 // pred_check
    _
  $region15: #{a_call__.6} parent=0 // pred_check_branch
    %22 = sbr.rel (0) target = $region17
  $region16: #{a_call__.6} parent=0 // pred_region
    _
  $region17: #{a_call__.6} parent=0 // pred_fallthru
    _
  %v24 = vld [vmem:[%s0] sm:$0xf]
  %v25 = vld [vmem:[%s0 + $0x4] sm:$0xf]
  %v26 = vld [vmem:[%s0 + $0x8] sm:$0xf]
  %v27 = vld [vmem:[%s0 + $0xc] sm:$0xf]
  %v28 = vld [vmem:[%s0 + $0x10] sm:$0xf]
  %v29 = vld [vmem:[%s0 + $0x14] sm:$0xf]
  %v30 = vld [vmem:[%s0 + $0x18] sm:$0xf]
  %v31 = vld [vmem:[%s0 + $0x1c] sm:$0xf]
  %v32 = vld [vmem:[%s0 + $0x20] sm:$0xf]
  %v33 = vld [vmem:[%s0 + $0x24] sm:$0xf]
  %v34 = vld [vmem:[%s0 + $0x28] sm:$0xf]
  %v35 = vld [vmem:[%s0 + $0x2c] sm:$0xf]
  %v36 = vld [vmem:[%s0 + $0x30] sm:$0xf]
  %v37 = vld [vmem:[%s0 + $0x34] sm:$0xf]
  %v38 = vld [vmem:[%s0 + $0x38] sm:$0xf]
  %v39 = vld [vmem:[%s0 + $0x3c] sm:$0xf]
  %v40 = vld [vmem:[%s1] sm:$0xf]
  %v41 = vld [vmem:[%s1 + $0x4] sm:$0xf]
  %v42 = vld [vmem:[%s1 + $0x8] sm:$0xf]
  %v43 = vld [vmem:[%s1 + $0xc] sm:$0xf]
  %v44 = vld [vmem:[%s1 + $0x10] sm:$0xf]
  %v45 = vld [vmem:[%s1 + $0x14] sm:$0xf]
  %v46 = vld [vmem:[%s1 + $0x18] sm:$0xf]
  %v47 = vld [vmem:[%s1 + $0x1c] sm:$0xf]
  %v48 = vld [vmem:[%s1 + $0x20] sm:$0xf]
  %v65 = vunpack.c.l.b16 %v24
  %v66 = vunpack.c.l.b16 %v25
  %v67 = vunpack.c.l.b16 %v26
  %v68 = vunpack.c.l.b16 %v27
  %v69 = vunpack.c.l.b16 %v28
  %v70 = vunpack.c.l.b16 %v29
  %v71 = vunpack.c.l.b16 %v30
  %v72 = vunpack.c.l.b16 %v31
  %v73 = vunpack.c.l.b16 %v32
  %v74 = vunpack.c.l.b16 %v33
  %v75 = vunpack.c.l.b16 %v34
  %v76 = vunpack.c.l.b16 %v35
  %v77 = vunpack.c.l.b16 %v36
  %v78 = vunpack.c.l.b16 %v37
  %v79 = vunpack.c.l.b16 %v38
  %v80 = vunpack.c.l.b16 %v39
  %v81 = vpack.c.b16 %v66, %v65
  %v82 = vpack.c.b16 %v68, %v67
  %v83 = vpack.c.b16 %v70, %v69
  %v84 = vpack.c.b16 %v72, %v71
  %v85 = vpack.c.b16 %v74, %v73
  %v86 = vpack.c.b16 %v76, %v75
  %v87 = vpack.c.b16 %v78, %v77
  %v88 = vpack.c.b16 %v80, %v79
  %v98 = vunpack.c.l.b16 %v40
  %v99 = vunpack.c.l.b16 %v41
  %v100 = vunpack.c.l.b16 %v42
  %v101 = vunpack.c.l.b16 %v43
  %v102 = vunpack.c.l.b16 %v44
  %v103 = vunpack.c.l.b16 %v45
  %v104 = vunpack.c.l.b16 %v46
  %v105 = vunpack.c.l.b16 %v47
  %v106 = vunpack.c.l.b16 %v48
  %v107 = vpack.c.b16 %v99, %v98
  %v108 = vpack.c.b16 %v101, %v100
  %v109 = vpack.c.b16 %v103, %v102
  %v110 = vpack.c.b16 %v105, %v104
  %v111 = vpack.c.b16 %v106, %v106
  %vm116 = vcmask 588800
  %v118 = vsel %vm116, %v81, 0
  %v121 = vsel %vm116, %v82, 0
  %v124 = vsel %vm116, %v83, 0
  %v127 = vsel %vm116, %v84, 0
  %v130 = vsel %vm116, %v85, 0
  %v133 = vsel %vm116, %v86, 0
  %v136 = vsel %vm116, %v87, 0
  %v139 = vsel %vm116, %v88, 0
  %vm141 = vcmask 1043456
  %v143 = vsel %vm141, %v111, 0
  %145 = vmatprep.subr.bf16.mxu0 0
  %146 = vmatpush1.bf16.msra.mxu0 0
  %147 = vmatprep.subr.bf16.mxu0 0
  %148 = vmatpush1.bf16.msra.mxu0 0
  %149 = vmatprep.subr.bf16.mxu0 0
  %150 = vmatpush1.bf16.msra.mxu0 0
  %151 = vmatprep.subr.bf16.mxu0 0
  %152 = vmatpush1.bf16.msra.mxu0 %v143
  %153 = vmatprep.subr.bf16.mxu0 0
  %154 = vmatpush1.bf16.msra.mxu0 %v110
  %155 = vmatprep.subr.bf16.mxu0 0
  %156 = vmatpush1.bf16.msra.mxu0 %v109
  %157 = vmatprep.subr.bf16.mxu0 0
  %158 = vmatpush1.bf16.msra.mxu0 %v108
  %159 = vmatprep.subr.bf16.mxu0 0
  %160 = vmatpush1.bf16.msra.mxu0 %v107
  %161 = vmatprep.subr.bf16.mxu0 0
  %162 = vmatpush2.bf16.msra.mxu0 0
  %163 = vmatprep.subr.bf16.mxu0 0
  %164 = vmatpush2.bf16.msra.mxu0 0
  %165 = vmatprep.subr.bf16.mxu0 0
  %166 = vmatpush2.bf16.msra.mxu0 0
  %167 = vmatprep.subr.bf16.mxu0 0
  %168 = vmatpush2.bf16.msra.mxu0 0
  %169 = vmatprep.subr.bf16.mxu0 0
  %170 = vmatpush2.bf16.msra.mxu0 0
  %171 = vmatprep.subr.bf16.mxu0 0
  %172 = vmatpush2.bf16.msra.mxu0 0
  %173 = vmatprep.subr.bf16.mxu0 0
  %174 = vmatpush2.bf16.msra.mxu0 0
  %175 = vmatprep.subr.bf16.mxu0 0
  %176 = vmatpush2.bf16.msra.mxu0 0
  %177 = vmatprep.mubr.bf16.mxu0 0
  %178 = vmatmul.mubr.bf16.gmra.mxu0 %v118
  %v179 = vpop.f32.mrf.mxu0
  %v180 = vadd.f32 0.0, %v179
  %v181 = vpop.f32.mrf.mxu0
  %v182 = vpop.f32.mrf.mxu0
  %v183 = vadd.f32 0.0, %v182
  %v184 = vpop.f32.mrf.mxu0
  %185 = vmatprep.mubr.bf16.mxu0 0
  %186 = vmatmul.mubr.bf16.gmra.mxu0 %v121
  %v187 = vpop.f32.mrf.mxu0
  %v188 = vadd.f32 0.0, %v187
  %v189 = vpop.f32.mrf.mxu0
  %v190 = vpop.f32.mrf.mxu0
  %v191 = vadd.f32 0.0, %v190
  %v192 = vpop.f32.mrf.mxu0
  %193 = vmatprep.mubr.bf16.mxu0 0
  %194 = vmatmul.mubr.bf16.gmra.mxu0 %v124
  %v195 = vpop.f32.mrf.mxu0
  %v196 = vadd.f32 0.0, %v195
  %v197 = vpop.f32.mrf.mxu0
  %v198 = vpop.f32.mrf.mxu0
  %v199 = vadd.f32 0.0, %v198
  %v200 = vpop.f32.mrf.mxu0
  %201 = vmatprep.mubr.bf16.mxu0 0
  %202 = vmatmul.mubr.bf16.gmra.mxu0 %v127
  %v203 = vpop.f32.mrf.mxu0
  %v204 = vadd.f32 0.0, %v203
  %v205 = vpop.f32.mrf.mxu0
  %v206 = vpop.f32.mrf.mxu0
  %v207 = vadd.f32 0.0, %v206
  %v208 = vpop.f32.mrf.mxu0
  %209 = vmatprep.mubr.bf16.mxu0 0
  %210 = vmatmul.mubr.bf16.gmra.mxu0 %v130
  %v211 = vpop.f32.mrf.mxu0
  %v212 = vadd.f32 0.0, %v211
  %v213 = vpop.f32.mrf.mxu0
  %v214 = vpop.f32.mrf.mxu0
  %v215 = vadd.f32 0.0, %v214
  %v216 = vpop.f32.mrf.mxu0
  %217 = vmatprep.mubr.bf16.mxu0 0
  %218 = vmatmul.mubr.bf16.gmra.mxu0 %v133
  %v219 = vpop.f32.mrf.mxu0
  %v220 = vadd.f32 0.0, %v219
  %v221 = vpop.f32.mrf.mxu0
  %v222 = vpop.f32.mrf.mxu0
  %v223 = vadd.f32 0.0, %v222
  %v224 = vpop.f32.mrf.mxu0
  %225 = vmatprep.mubr.bf16.mxu0 0
  %226 = vmatmul.mubr.bf16.gmra.mxu0 %v136
  %v227 = vpop.f32.mrf.mxu0
  %v228 = vadd.f32 0.0, %v227
  %v229 = vpop.f32.mrf.mxu0
  %v230 = vpop.f32.mrf.mxu0
  %v231 = vadd.f32 0.0, %v230
  %v232 = vpop.f32.mrf.mxu0
  %233 = vmatprep.mubr.bf16.mxu0 0
  %234 = vmatmul.mubr.bf16.gmra.mxu0 %v139
  %v235 = vpop.f32.mrf.mxu0
  %v236 = vadd.f32 0.0, %v235
  %v237 = vpop.f32.mrf.mxu0
  %v238 = vpop.f32.mrf.mxu0
  %v239 = vadd.f32 0.0, %v238
  %v240 = vpop.f32.mrf.mxu0
  %241 = vdwg.mxu0
  %v242 = vpack.c.bf16 %v183, %v180
  %v243 = vpack.c.bf16 %v191, %v188
  %v244 = vpack.c.bf16 %v199, %v196
  %v245 = vpack.c.bf16 %v207, %v204
  %v246 = vpack.c.bf16 %v215, %v212
  %v247 = vpack.c.bf16 %v223, %v220
  %v248 = vpack.c.bf16 %v231, %v228
  %v249 = vpack.c.bf16 %v239, %v236
  %v258 = vunpack.c.l.b16 %v242
  %v259 = vunpack.c.h.b16 %v242
  %v260 = vunpack.c.l.b16 %v243
  %v261 = vunpack.c.h.b16 %v243
  %v262 = vunpack.c.l.b16 %v244
  %v263 = vunpack.c.h.b16 %v244
  %v264 = vunpack.c.l.b16 %v245
  %v265 = vunpack.c.h.b16 %v245
  %v266 = vunpack.c.l.b16 %v246
  %v267 = vunpack.c.h.b16 %v246
  %v268 = vunpack.c.l.b16 %v247
  %v269 = vunpack.c.h.b16 %v247
  %v270 = vunpack.c.l.b16 %v248
  %v271 = vunpack.c.h.b16 %v248
  %v272 = vunpack.c.l.b16 %v249
  %v273 = vunpack.c.h.b16 %v249
  %v274 = vpack.c.b16 %v258, %v258
  %v275 = vpack.c.b16 %v259, %v259
  %v276 = vpack.c.b16 %v260, %v260
  %v277 = vpack.c.b16 %v261, %v261
  %v278 = vpack.c.b16 %v262, %v262
  %v279 = vpack.c.b16 %v263, %v263
  %v280 = vpack.c.b16 %v264, %v264
  %v281 = vpack.c.b16 %v265, %v265
  %v282 = vpack.c.b16 %v266, %v266
  %v283 = vpack.c.b16 %v267, %v267
  %v284 = vpack.c.b16 %v268, %v268
  %v285 = vpack.c.b16 %v269, %v269
  %v286 = vpack.c.b16 %v270, %v270
  %v287 = vpack.c.b16 %v271, %v271
  %v288 = vpack.c.b16 %v272, %v272
  %v289 = vpack.c.b16 %v273, %v273
  %306 = vst [vmem:[%s4] sm:$0xf] %v274
  %307 = vst [vmem:[%s4 + $0x4] sm:$0xf] %v275
  %308 = vst [vmem:[%s4 + $0x8] sm:$0xf] %v276
  %309 = vst [vmem:[%s4 + $0xc] sm:$0xf] %v277
  %310 = vst [vmem:[%s4 + $0x10] sm:$0xf] %v278
  %311 = vst [vmem:[%s4 + $0x14] sm:$0xf] %v279
  %312 = vst [vmem:[%s4 + $0x18] sm:$0xf] %v280
  %313 = vst [vmem:[%s4 + $0x1c] sm:$0xf] %v281
  %314 = vst [vmem:[%s4 + $0x20] sm:$0xf] %v282
  %315 = vst [vmem:[%s4 + $0x24] sm:$0xf] %v283
  %316 = vst [vmem:[%s4 + $0x28] sm:$0xf] %v284
  %317 = vst [vmem:[%s4 + $0x2c] sm:$0xf] %v285
  %318 = vst [vmem:[%s4 + $0x30] sm:$0xf] %v286
  %319 = vst [vmem:[%s4 + $0x34] sm:$0xf] %v287
  %320 = vst [vmem:[%s4 + $0x38] sm:$0xf] %v288
  %321 = vst [vmem:[%s4 + $0x3c] sm:$0xf] %v289
  %v322 = vadd.f32 %v180, %v183
  %v323 = vadd.f32 %v322, %v188
  %v324 = vadd.f32 %v323, %v191
  %v325 = vadd.f32 %v324, %v196
  %v326 = vadd.f32 %v325, %v199
  %v327 = vadd.f32 %v326, %v204
  %v328 = vadd.f32 %v327, %v207
  %v329 = vadd.f32 %v328, %v212
  %v330 = vadd.f32 %v329, %v215
  %v331 = vadd.f32 %v330, %v220
  %v332 = vadd.f32 %v331, %v223
  %v333 = vadd.f32 %v332, %v228
  %v334 = vadd.f32 %v333, %v231
  %v335 = vadd.f32 %v334, %v236
  %v336 = vadd.f32 %v335, %v239
  %v337 = vrot.slane %v336, 4
  %v338 = vadd.f32 %v336, %v337
  %v339 = vrot.slane %v338, 2
  %v340 = vadd.f32 %v338, %v339
  %v341 = vrot.slane %v340, 1
  %v342 = vadd.f32 %v340, %v341
  %343 = vst [vmem:[%s5] sm:$0x1] %v342
  %v344 = vmul.f32 %v180, %v180
  %v345 = vmul.f32 %v183, %v183
  %v346 = vmul.f32 %v188, %v188
  %v347 = vmul.f32 %v191, %v191
  %v348 = vmul.f32 %v196, %v196
  %v349 = vmul.f32 %v199, %v199
  %v350 = vmul.f32 %v204, %v204
  %v351 = vmul.f32 %v207, %v207
  %v352 = vmul.f32 %v212, %v212
  %v353 = vmul.f32 %v215, %v215
  %v354 = vmul.f32 %v220, %v220
  %v355 = vmul.f32 %v223, %v223
  %v356 = vmul.f32 %v228, %v228
  %v357 = vmul.f32 %v231, %v231
  %v358 = vmul.f32 %v236, %v236
  %v359 = vmul.f32 %v239, %v239
  %v360 = vadd.f32 %v344, %v345
  %v361 = vadd.f32 %v360, %v346
  %v362 = vadd.f32 %v361, %v347
  %v363 = vadd.f32 %v362, %v348
  %v364 = vadd.f32 %v363, %v349
  %v365 = vadd.f32 %v364, %v350
  %v366 = vadd.f32 %v365, %v351
  %v367 = vadd.f32 %v366, %v352
  %v368 = vadd.f32 %v367, %v353
  %v369 = vadd.f32 %v368, %v354
  %v370 = vadd.f32 %v369, %v355
  %v371 = vadd.f32 %v370, %v356
  %v372 = vadd.f32 %v371, %v357
  %v373 = vadd.f32 %v372, %v358
  %v374 = vadd.f32 %v373, %v359
  %v375 = vrot.slane %v374, 4
  %v376 = vadd.f32 %v374, %v375
  %v377 = vrot.slane %v376, 2
  %v378 = vadd.f32 %v376, %v377
  %v379 = vrot.slane %v378, 1
  %v380 = vadd.f32 %v378, %v379
  %381 = vst [vmem:[%s6] sm:$0x1] %v380
  %v382 = vld [vmem:[%s2] sm:$0xf]
  %v383 = vld [vmem:[%s2 + $0x4] sm:$0xf]
  %v384 = vld [vmem:[%s2 + $0x8] sm:$0xf]
  %v385 = vld [vmem:[%s2 + $0xc] sm:$0xf]
  %v386 = vld [vmem:[%s2 + $0x10] sm:$0xf]
  %v387 = vld [vmem:[%s2 + $0x14] sm:$0xf]
  %v388 = vld [vmem:[%s2 + $0x18] sm:$0xf]
  %v389 = vld [vmem:[%s2 + $0x1c] sm:$0xf]
  %v390 = vld [vmem:[%s2 + $0x20] sm:$0xf]
  %v391 = vld [vmem:[%s2 + $0x24] sm:$0xf]
  %v392 = vld [vmem:[%s2 + $0x28] sm:$0xf]
  %v393 = vld [vmem:[%s2 + $0x2c] sm:$0xf]
  %v394 = vld [vmem:[%s2 + $0x30] sm:$0xf]
  %v395 = vld [vmem:[%s2 + $0x34] sm:$0xf]
  %v396 = vld [vmem:[%s2 + $0x38] sm:$0xf]
  %v397 = vld [vmem:[%s2 + $0x3c] sm:$0xf]
  %v398 = vld [vmem:[%s3] sm:$0x3]
  %v415 = vunpack.c.l.b16 %v382
  %v416 = vunpack.c.l.b16 %v383
  %v417 = vunpack.c.l.b16 %v384
  %v418 = vunpack.c.l.b16 %v385
  %v419 = vunpack.c.l.b16 %v386
  %v420 = vunpack.c.l.b16 %v387
  %v421 = vunpack.c.l.b16 %v388
  %v422 = vunpack.c.l.b16 %v389
  %v423 = vunpack.c.l.b16 %v390
  %v424 = vunpack.c.l.b16 %v391
  %v425 = vunpack.c.l.b16 %v392
  %v426 = vunpack.c.l.b16 %v393
  %v427 = vunpack.c.l.b16 %v394
  %v428 = vunpack.c.l.b16 %v395
  %v429 = vunpack.c.l.b16 %v396
  %v430 = vunpack.c.l.b16 %v397
  %v431 = vpack.c.b16 %v416, %v415
  %v432 = vpack.c.b16 %v418, %v417
  %v433 = vpack.c.b16 %v420, %v419
  %v434 = vpack.c.b16 %v422, %v421
  %v435 = vpack.c.b16 %v424, %v423
  %v436 = vpack.c.b16 %v426, %v425
  %v437 = vpack.c.b16 %v428, %v427
  %v438 = vpack.c.b16 %v430, %v429
  %vm439 = vcmask 31744
  %v441 = vsel %vm439, %v431, 0
  %v444 = vsel %vm439, %v432, 0
  %v447 = vsel %vm439, %v433, 0
  %v450 = vsel %vm439, %v434, 0
  %v453 = vsel %vm439, %v435, 0
  %v456 = vsel %vm439, %v436, 0
  %v459 = vsel %vm439, %v437, 0
  %v462 = vsel %vm439, %v438, 0
  %vm464 = vcmask 1041408
  %v466 = vsel %vm464, %v398, 0
  %468 = vmatprep.subr.bf16.mxu0 0
  %469 = vmatpush1.bf16.msra.mxu0 0
  %470 = vmatprep.subr.bf16.mxu0 0
  %471 = vmatpush1.bf16.msra.mxu0 0
  %472 = vmatprep.subr.bf16.mxu0 0
  %473 = vmatpush1.bf16.msra.mxu0 0
  %474 = vmatprep.subr.bf16.mxu0 0
  %475 = vmatpush1.bf16.msra.mxu0 0
  %476 = vmatprep.subr.bf16.mxu0 0
  %477 = vmatpush1.bf16.msra.mxu0 0
  %478 = vmatprep.subr.bf16.mxu0 0
  %479 = vmatpush1.bf16.msra.mxu0 0
  %480 = vmatprep.subr.bf16.mxu0 0
  %481 = vmatpush1.bf16.msra.mxu0 0
  %482 = vmatprep.subr.bf16.mxu0 0
  %483 = vmatpush1.bf16.msra.mxu0 %v466
  %484 = vmatprep.subr.bf16.mxu0 0
  %485 = vmatpush2.bf16.msra.mxu0 0
  %486 = vmatprep.subr.bf16.mxu0 0
  %487 = vmatpush2.bf16.msra.mxu0 0
  %488 = vmatprep.subr.bf16.mxu0 0
  %489 = vmatpush2.bf16.msra.mxu0 0
  %490 = vmatprep.subr.bf16.mxu0 0
  %491 = vmatpush2.bf16.msra.mxu0 0
  %492 = vmatprep.subr.bf16.mxu0 0
  %493 = vmatpush2.bf16.msra.mxu0 0
  %494 = vmatprep.subr.bf16.mxu0 0
  %495 = vmatpush2.bf16.msra.mxu0 0
  %496 = vmatprep.subr.bf16.mxu0 0
  %497 = vmatpush2.bf16.msra.mxu0 0
  %498 = vmatprep.subr.bf16.mxu0 0
  %499 = vmatpush2.bf16.msra.mxu0 0
  %500 = vmatprep.mubr.bf16.mxu0 0
  %501 = vmatmul.mubr.bf16.gmra.mxu0 %v441
  %v502 = vpop.f32.mrf.mxu0
  %v503 = vadd.f32 0.0, %v502
  %v504 = vpop.f32.mrf.mxu0
  %v505 = vpop.f32.mrf.mxu0
  %v506 = vadd.f32 0.0, %v505
  %v507 = vpop.f32.mrf.mxu0
  %508 = vmatprep.mubr.bf16.mxu0 0
  %509 = vmatmul.mubr.bf16.gmra.mxu0 %v444
  %v510 = vpop.f32.mrf.mxu0
  %v511 = vadd.f32 0.0, %v510
  %v512 = vpop.f32.mrf.mxu0
  %v513 = vpop.f32.mrf.mxu0
  %v514 = vadd.f32 0.0, %v513
  %v515 = vpop.f32.mrf.mxu0
  %516 = vmatprep.mubr.bf16.mxu0 0
  %517 = vmatmul.mubr.bf16.gmra.mxu0 %v447
  %v518 = vpop.f32.mrf.mxu0
  %v519 = vadd.f32 0.0, %v518
  %v520 = vpop.f32.mrf.mxu0
  %v521 = vpop.f32.mrf.mxu0
  %v522 = vadd.f32 0.0, %v521
  %v523 = vpop.f32.mrf.mxu0
  %524 = vmatprep.mubr.bf16.mxu0 0
  %525 = vmatmul.mubr.bf16.gmra.mxu0 %v450
  %v526 = vpop.f32.mrf.mxu0
  %v527 = vadd.f32 0.0, %v526
  %v528 = vpop.f32.mrf.mxu0
  %v529 = vpop.f32.mrf.mxu0
  %v530 = vadd.f32 0.0, %v529
  %v531 = vpop.f32.mrf.mxu0
  %532 = vmatprep.mubr.bf16.mxu0 0
  %533 = vmatmul.mubr.bf16.gmra.mxu0 %v453
  %v534 = vpop.f32.mrf.mxu0
  %v535 = vadd.f32 0.0, %v534
  %v536 = vpop.f32.mrf.mxu0
  %v537 = vpop.f32.mrf.mxu0
  %v538 = vadd.f32 0.0, %v537
  %v539 = vpop.f32.mrf.mxu0
  %540 = vmatprep.mubr.bf16.mxu0 0
  %541 = vmatmul.mubr.bf16.gmra.mxu0 %v456
  %v542 = vpop.f32.mrf.mxu0
  %v543 = vadd.f32 0.0, %v542
  %v544 = vpop.f32.mrf.mxu0
  %v545 = vpop.f32.mrf.mxu0
  %v546 = vadd.f32 0.0, %v545
  %v547 = vpop.f32.mrf.mxu0
  %548 = vmatprep.mubr.bf16.mxu0 0
  %549 = vmatmul.mubr.bf16.gmra.mxu0 %v459
  %v550 = vpop.f32.mrf.mxu0
  %v551 = vadd.f32 0.0, %v550
  %v552 = vpop.f32.mrf.mxu0
  %v553 = vpop.f32.mrf.mxu0
  %v554 = vadd.f32 0.0, %v553
  %v555 = vpop.f32.mrf.mxu0
  %556 = vmatprep.mubr.bf16.mxu0 0
  %557 = vmatmul.mubr.bf16.gmra.mxu0 %v462
  %v558 = vpop.f32.mrf.mxu0
  %v559 = vadd.f32 0.0, %v558
  %v560 = vpop.f32.mrf.mxu0
  %v561 = vpop.f32.mrf.mxu0
  %v562 = vadd.f32 0.0, %v561
  %v563 = vpop.f32.mrf.mxu0
  %564 = vdwg.mxu0
  %v565 = vpack.c.bf16 %v506, %v503
  %v566 = vpack.c.bf16 %v514, %v511
  %v567 = vpack.c.bf16 %v522, %v519
  %v568 = vpack.c.bf16 %v530, %v527
  %v569 = vpack.c.bf16 %v538, %v535
  %v570 = vpack.c.bf16 %v546, %v543
  %v571 = vpack.c.bf16 %v554, %v551
  %v572 = vpack.c.bf16 %v562, %v559
  %v581 = vunpack.c.l.b16 %v565
  %v582 = vunpack.c.h.b16 %v565
  %v583 = vunpack.c.l.b16 %v566
  %v584 = vunpack.c.h.b16 %v566
  %v585 = vunpack.c.l.b16 %v567
  %v586 = vunpack.c.h.b16 %v567
  %v587 = vunpack.c.l.b16 %v568
  %v588 = vunpack.c.h.b16 %v568
  %v589 = vunpack.c.l.b16 %v569
  %v590 = vunpack.c.h.b16 %v569
  %v591 = vunpack.c.l.b16 %v570
  %v592 = vunpack.c.h.b16 %v570
  %v593 = vunpack.c.l.b16 %v571
  %v594 = vunpack.c.h.b16 %v571
  %v595 = vunpack.c.l.b16 %v572
  %v596 = vunpack.c.h.b16 %v572
  %v597 = vpack.c.b16 %v581, %v581
  %v598 = vpack.c.b16 %v582, %v582
  %v599 = vpack.c.b16 %v583, %v583
  %v600 = vpack.c.b16 %v584, %v584
  %v601 = vpack.c.b16 %v585, %v585
  %v602 = vpack.c.b16 %v586, %v586
  %v603 = vpack.c.b16 %v587, %v587
  %v604 = vpack.c.b16 %v588, %v588
  %v605 = vpack.c.b16 %v589, %v589
  %v606 = vpack.c.b16 %v590, %v590
  %v607 = vpack.c.b16 %v591, %v591
  %v608 = vpack.c.b16 %v592, %v592
  %v609 = vpack.c.b16 %v593, %v593
  %v610 = vpack.c.b16 %v594, %v594
  %v611 = vpack.c.b16 %v595, %v595
  %v612 = vpack.c.b16 %v596, %v596
  %629 = vst [vmem:[%s7] sm:$0xf] %v597
  %630 = vst [vmem:[%s7 + $0x4] sm:$0xf] %v598
  %631 = vst [vmem:[%s7 + $0x8] sm:$0xf] %v599
  %632 = vst [vmem:[%s7 + $0xc] sm:$0xf] %v600
  %633 = vst [vmem:[%s7 + $0x10] sm:$0xf] %v601
  %634 = vst [vmem:[%s7 + $0x14] sm:$0xf] %v602
  %635 = vst [vmem:[%s7 + $0x18] sm:$0xf] %v603
  %636 = vst [vmem:[%s7 + $0x1c] sm:$0xf] %v604
  %637 = vst [vmem:[%s7 + $0x20] sm:$0xf] %v605
  %638 = vst [vmem:[%s7 + $0x24] sm:$0xf] %v606
  %639 = vst [vmem:[%s7 + $0x28] sm:$0xf] %v607
  %640 = vst [vmem:[%s7 + $0x2c] sm:$0xf] %v608
  %641 = vst [vmem:[%s7 + $0x30] sm:$0xf] %v609
  %642 = vst [vmem:[%s7 + $0x34] sm:$0xf] %v610
  %643 = vst [vmem:[%s7 + $0x38] sm:$0xf] %v611
  %644 = vst [vmem:[%s7 + $0x3c] sm:$0xf] %v612
  %v645 = vadd.f32 %v503, %v506
  %v646 = vadd.f32 %v645, %v511
  %v647 = vadd.f32 %v646, %v514
  %v648 = vadd.f32 %v647, %v519
  %v649 = vadd.f32 %v648, %v522
  %v650 = vadd.f32 %v649, %v527
  %v651 = vadd.f32 %v650, %v530
  %v652 = vadd.f32 %v651, %v535
  %v653 = vadd.f32 %v652, %v538
  %v654 = vadd.f32 %v653, %v543
  %v655 = vadd.f32 %v654, %v546
  %v656 = vadd.f32 %v655, %v551
  %v657 = vadd.f32 %v656, %v554
  %v658 = vadd.f32 %v657, %v559
  %v659 = vadd.f32 %v658, %v562
  %v660 = vrot.slane %v659, 4
  %v661 = vadd.f32 %v659, %v660
  %v662 = vrot.slane %v661, 2
  %v663 = vadd.f32 %v661, %v662
  %v664 = vrot.slane %v663, 1
  %v665 = vadd.f32 %v663, %v664
  %666 = vst [vmem:[%s8] sm:$0x1] %v665
  %v667 = vmul.f32 %v503, %v503
  %v668 = vmul.f32 %v506, %v506
  %v669 = vmul.f32 %v511, %v511
  %v670 = vmul.f32 %v514, %v514
  %v671 = vmul.f32 %v519, %v519
  %v672 = vmul.f32 %v522, %v522
  %v673 = vmul.f32 %v527, %v527
  %v674 = vmul.f32 %v530, %v530
  %v675 = vmul.f32 %v535, %v535
  %v676 = vmul.f32 %v538, %v538
  %v677 = vmul.f32 %v543, %v543
  %v678 = vmul.f32 %v546, %v546
  %v679 = vmul.f32 %v551, %v551
  %v680 = vmul.f32 %v554, %v554
  %v681 = vmul.f32 %v559, %v559
  %v682 = vmul.f32 %v562, %v562
  %v683 = vadd.f32 %v667, %v668
  %v684 = vadd.f32 %v683, %v669
  %v685 = vadd.f32 %v684, %v670
  %v686 = vadd.f32 %v685, %v671
  %v687 = vadd.f32 %v686, %v672
  %v688 = vadd.f32 %v687, %v673
  %v689 = vadd.f32 %v688, %v674
  %v690 = vadd.f32 %v689, %v675
  %v691 = vadd.f32 %v690, %v676
  %v692 = vadd.f32 %v691, %v677
  %v693 = vadd.f32 %v692, %v678
  %v694 = vadd.f32 %v693, %v679
  %v695 = vadd.f32 %v694, %v680
  %v696 = vadd.f32 %v695, %v681
  %v697 = vadd.f32 %v696, %v682
  %v698 = vrot.slane %v697, 4
  %v699 = vadd.f32 %v697, %v698
  %v700 = vrot.slane %v699, 2
  %v701 = vadd.f32 %v699, %v700
  %v702 = vrot.slane %v701, 1
  %v703 = vadd.f32 %v701, %v702
  %704 = vst [vmem:[%s9] sm:$0x1] %v703
  // Predicated region
  $region18: #{a_call__.6} parent=0 // pred_check
    _
  $region19: #{a_call__.6} parent=0 // pred_check_branch
    %706 = sbr.rel (0) target = $region21
  $region20: #{a_call__.6} parent=0 // pred_region
    _
  $region21: #{a_call__.6} parent=0 // pred_fallthru
    _
  // Predicated region
  $region22: #{a_call__.6} parent=0 // pred_check
    _
  $region23: #{a_call__.6} parent=0 // pred_check_branch
    %708 = sbr.rel (0) target = $region25
  $region24: #{a_call__.6} parent=0 // pred_region
    _
  $region25: #{a_call__.6} parent=0 // pred_fallthru
    _
  // Predicated region
  $region26: #{a_call__.6} parent=0 // pred_check
    _
  $region27: #{a_call__.6} parent=0 // pred_check_branch
    %710 = sbr.rel (0) target = $region29
  $region28: #{a_call__.6} parent=0 // pred_region
    _
  $region29: #{a_call__.6} parent=0 // pred_fallthru
    _
  // Predicated region
  $region30: #{a_call__.6} parent=0 // pred_check
    _
  $region31: #{a_call__.6} parent=0 // pred_check_branch
    %712 = sbr.rel (0) target = $region33
  $region32: #{a_call__.6} parent=0 // pred_region
    _
  $region33: #{a_call__.6} parent=0 // pred_fallthru
    _
  // Predicated region
  $region34: #{a_call__.6} parent=0 // pred_check
    _
  $region35: #{a_call__.6} parent=0 // pred_check_branch
    %714 = sbr.rel (0) target = $region37
  $region36: #{a_call__.6} parent=0 // pred_region
    _
  $region37: #{a_call__.6} parent=0 // pred_fallthru
    _
  // Predicated region
  $region38: #{a_call__.6} parent=0 // pred_check
    _
  $region39: #{a_call__.6} parent=0 // pred_check_branch
    %716 = sbr.rel (0) target = $region41
  $region40: #{a_call__.6} parent=0 // pred_region
    _
  $region41: #{a_call__.6} parent=0 // pred_fallthru
    _
  // Predicated region
  $region42: #{a_call__.6} parent=0 // pred_check
    _
  $region43: #{a_call__.6} parent=0 // pred_check_branch
    %718 = sbr.rel (0) target = $region45
  $region44: #{a_call__.6} parent=0 // pred_region
    _
  $region45: #{a_call__.6} parent=0 // pred_fallthru
    _
  // Predicated region
  $region46: #{a_call__.6} parent=0 // pred_check
    _
  $region47: #{a_call__.6} parent=0 // pred_check_branch
    %720 = sbr.rel (0) target = $region49
  $region48: #{a_call__.6} parent=0 // pred_region
    _
  $region49: #{a_call__.6} parent=0 // pred_fallthru
    _
  // Predicated region
  $region50: #{a_call__.6} parent=0 // pred_check
    _
  $region51: #{a_call__.6} parent=0 // pred_check_branch
    %722 = sbr.rel (0) target = $region53
  $region52: #{a_call__.6} parent=0 // pred_region
    _
  $region53: #{a_call__.6} parent=0 // pred_fallthru
    _
  // Predicated region
  $region54: #{a_call__.6} parent=0 // pred_check
    _
  $region55: #{a_call__.6} parent=0 // pred_check_branch
    %724 = sbr.rel (0) target = $region57
  $region56: #{a_call__.6} parent=0 // pred_region
    _
  $region57: #{a_call__.6} parent=0 // pred_fallthru
    _
  // Predicated region
  $region58: #{a_call__.6} parent=0 // pred_check
    _
  $region59: #{a_call__.6} parent=0 // pred_check_branch
    %726 = sbr.rel (0) target = $region61
  $region60: #{a_call__.6} parent=0 // pred_region
    _
  $region61: #{a_call__.6} parent=0 // pred_fallthru
    _
  // Predicated region
  $region62: #{a_call__.6} parent=0 // pred_check
    _
  $region63: #{a_call__.6} parent=0 // pred_check_branch
    %728 = sbr.rel (0) target = $region65
  $region64: #{a_call__.6} parent=0 // pred_region
    _
  $region65: #{a_call__.6} parent=0 // pred_fallthru
    _

// kernel: a_call__.7
$region0: #{a_call__.7}
  #allocation0 [shape = 'u32[]', space=smem, size = 0x4, offset = 0x4, fixed_abs, tag = 'smem constant byte address 0x4 - core index']
  #allocation1 [shape = 'u32[144,128]{1,0:T(1,128)}', space=vmem, size = 0x12000, scoped, tag = 'internal scratch']
  %s0 = inlined_call_operand.vmem [shape: bf16[128,128], index: 0, kind: input, shape index: {}]
  %s1 = inlined_call_operand.vmem [shape: f32[1,128], index: 1, kind: input, shape index: {}]
  %s2 = inlined_call_operand.vmem [shape: f32[1,128], index: 2, kind: input, shape index: {}]
  %s3 = inlined_call_operand.vmem [shape: bf16[128,128], index: 3, kind: input, shape index: {}]
  %s4 = inlined_call_operand.vmem [shape: f32[1,128], index: 4, kind: input, shape index: {}]
  %s5 = inlined_call_operand.vmem [shape: f32[1,128], index: 5, kind: input, shape index: {}]
  %s6 = inlined_call_operand.vmem [shape: bf16[128,128], index: 6, kind: output, shape index: {}]
  %s7 = sld [smem:[#allocation0]]
  $region34: #{a_call__.7} parent=0
    _
  %s9 = ssub.s32 1, %s7
  %s10 = scalar_select 0, %s9, %s7
  // Predicated region
  $region2: #{a_call__.7} parent=0 // pred_check
    _
  $region3: #{a_call__.7} parent=0 // pred_check_branch
    %12 = sbr.rel (0) target = $region5
  $region4: #{a_call__.7} parent=0 // pred_region
    _
  $region5: #{a_call__.7} parent=0 // pred_fallthru
    _
  // Predicated region
  $region6: #{a_call__.7} parent=0 // pred_check
    _
  $region7: #{a_call__.7} parent=0 // pred_check_branch
    %14 = sbr.rel (0) target = $region9
  $region8: #{a_call__.7} parent=0 // pred_region
    _
  $region9: #{a_call__.7} parent=0 // pred_fallthru
    _
  // Predicated region
  $region10: #{a_call__.7} parent=0 // pred_check
    _
  $region11: #{a_call__.7} parent=0 // pred_check_branch
    %16 = sbr.rel (0) target = $region13
  $region12: #{a_call__.7} parent=0 // pred_region
    _
  $region13: #{a_call__.7} parent=0 // pred_fallthru
    _
  // Predicated region
  $region14: #{a_call__.7} parent=0 // pred_check
    _
  $region15: #{a_call__.7} parent=0 // pred_check_branch
    %18 = sbr.rel (0) target = $region17
  $region16: #{a_call__.7} parent=0 // pred_region
    _
  $region17: #{a_call__.7} parent=0 // pred_fallthru
    _
  // Predicated region
  $region18: #{a_call__.7} parent=0 // pred_check
    _
  $region19: #{a_call__.7} parent=0 // pred_check_branch
    %20 = sbr.rel (0) target = $region21
  $region20: #{a_call__.7} parent=0 // pred_region
    _
  $region21: #{a_call__.7} parent=0 // pred_fallthru
    _
  // Predicated region
  $region22: #{a_call__.7} parent=0 // pred_check
    _
  $region23: #{a_call__.7} parent=0 // pred_check_branch
    %22 = sbr.rel (0) target = $region25
  $region24: #{a_call__.7} parent=0 // pred_region
    _
  $region25: #{a_call__.7} parent=0 // pred_fallthru
    _
  %v23 = vld [vmem:[%s0] sm:$0xf]
  %v24 = vld [vmem:[%s0 + $0x4] sm:$0xf]
  %v25 = vld [vmem:[%s0 + $0x8] sm:$0xf]
  %v26 = vld [vmem:[%s0 + $0xc] sm:$0xf]
  %v27 = vld [vmem:[%s0 + $0x10] sm:$0xf]
  %v28 = vld [vmem:[%s0 + $0x14] sm:$0xf]
  %v29 = vld [vmem:[%s0 + $0x18] sm:$0xf]
  %v30 = vld [vmem:[%s0 + $0x1c] sm:$0xf]
  %v31 = vld [vmem:[%s0 + $0x20] sm:$0xf]
  %v32 = vld [vmem:[%s0 + $0x24] sm:$0xf]
  %v33 = vld [vmem:[%s0 + $0x28] sm:$0xf]
  %v34 = vld [vmem:[%s0 + $0x2c] sm:$0xf]
  %v35 = vld [vmem:[%s0 + $0x30] sm:$0xf]
  %v36 = vld [vmem:[%s0 + $0x34] sm:$0xf]
  %v37 = vld [vmem:[%s0 + $0x38] sm:$0xf]
  %v38 = vld [vmem:[%s0 + $0x3c] sm:$0xf]
  %v39 = vunpack.c.l.bf16 %v23
  %v40 = vunpack.c.l.bf16 %v24
  %v41 = vunpack.c.l.bf16 %v25
  %v42 = vunpack.c.l.bf16 %v26
  %v43 = vunpack.c.l.bf16 %v27
  %v44 = vunpack.c.l.bf16 %v28
  %v45 = vunpack.c.l.bf16 %v29
  %v46 = vunpack.c.l.bf16 %v30
  %v47 = vunpack.c.l.bf16 %v31
  %v48 = vunpack.c.l.bf16 %v32
  %v49 = vunpack.c.l.bf16 %v33
  %v50 = vunpack.c.l.bf16 %v34
  %v51 = vunpack.c.l.bf16 %v35
  %v52 = vunpack.c.l.bf16 %v36
  %v53 = vunpack.c.l.bf16 %v37
  %v54 = vunpack.c.l.bf16 %v38
  %v55 = vld [vmem:[%s1] sm:$0x1]
  %v57 = vlaneseq
  %v58 = vshrl.u32 %v57, 7
  %v59 = vsub.s32 0, %v58
  %v60 = vrot.slane %v55, %v59
  %v62 = vmul.f32 %v39, %v60
  %v63 = vmul.f32 %v40, %v60
  %v64 = vmul.f32 %v41, %v60
  %v65 = vmul.f32 %v42, %v60
  %v66 = vmul.f32 %v43, %v60
  %v67 = vmul.f32 %v44, %v60
  %v68 = vmul.f32 %v45, %v60
  %v69 = vmul.f32 %v46, %v60
  %v70 = vmul.f32 %v47, %v60
  %v71 = vmul.f32 %v48, %v60
  %v72 = vmul.f32 %v49, %v60
  %v73 = vmul.f32 %v50, %v60
  %v74 = vmul.f32 %v51, %v60
  %v75 = vmul.f32 %v52, %v60
  %v76 = vmul.f32 %v53, %v60
  %v77 = vmul.f32 %v54, %v60
  %v78 = vld [vmem:[%s2] sm:$0x1]
  %v80 = vlaneseq
  %v81 = vshrl.u32 %v80, 7
  %v82 = vsub.s32 0, %v81
  %v83 = vrot.slane %v78, %v82
  %v85 = vadd.f32 %v62, %v83
  %v86 = vadd.f32 %v63, %v83
  %v87 = vadd.f32 %v64, %v83
  %v88 = vadd.f32 %v65, %v83
  %v89 = vadd.f32 %v66, %v83
  %v90 = vadd.f32 %v67, %v83
  %v91 = vadd.f32 %v68, %v83
  %v92 = vadd.f32 %v69, %v83
  %v93 = vadd.f32 %v70, %v83
  %v94 = vadd.f32 %v71, %v83
  %v95 = vadd.f32 %v72, %v83
  %v96 = vadd.f32 %v73, %v83
  %v97 = vadd.f32 %v74, %v83
  %v98 = vadd.f32 %v75, %v83
  %v99 = vadd.f32 %v76, %v83
  %v100 = vadd.f32 %v77, %v83
  %v101 = vld [vmem:[%s3] sm:$0xf]
  %v102 = vld [vmem:[%s3 + $0x4] sm:$0xf]
  %v103 = vld [vmem:[%s3 + $0x8] sm:$0xf]
  %v104 = vld [vmem:[%s3 + $0xc] sm:$0xf]
  %v105 = vld [vmem:[%s3 + $0x10] sm:$0xf]
  %v106 = vld [vmem:[%s3 + $0x14] sm:$0xf]
  %v107 = vld [vmem:[%s3 + $0x18] sm:$0xf]
  %v108 = vld [vmem:[%s3 + $0x1c] sm:$0xf]
  %v109 = vld [vmem:[%s3 + $0x20] sm:$0xf]
  %v110 = vld [vmem:[%s3 + $0x24] sm:$0xf]
  %v111 = vld [vmem:[%s3 + $0x28] sm:$0xf]
  %v112 = vld [vmem:[%s3 + $0x2c] sm:$0xf]
  %v113 = vld [vmem:[%s3 + $0x30] sm:$0xf]
  %v114 = vld [vmem:[%s3 + $0x34] sm:$0xf]
  %v115 = vld [vmem:[%s3 + $0x38] sm:$0xf]
  %v116 = vld [vmem:[%s3 + $0x3c] sm:$0xf]
  %v117 = vunpack.c.l.bf16 %v101
  %v118 = vunpack.c.l.bf16 %v102
  %v119 = vunpack.c.l.bf16 %v103
  %v120 = vunpack.c.l.bf16 %v104
  %v121 = vunpack.c.l.bf16 %v105
  %v122 = vunpack.c.l.bf16 %v106
  %v123 = vunpack.c.l.bf16 %v107
  %v124 = vunpack.c.l.bf16 %v108
  %v125 = vunpack.c.l.bf16 %v109
  %v126 = vunpack.c.l.bf16 %v110
  %v127 = vunpack.c.l.bf16 %v111
  %v128 = vunpack.c.l.bf16 %v112
  %v129 = vunpack.c.l.bf16 %v113
  %v130 = vunpack.c.l.bf16 %v114
  %v131 = vunpack.c.l.bf16 %v115
  %v132 = vunpack.c.l.bf16 %v116
  %v133 = vld [vmem:[%s4] sm:$0x1]
  %v135 = vlaneseq
  %v136 = vshrl.u32 %v135, 7
  %v137 = vsub.s32 0, %v136
  %v138 = vrot.slane %v133, %v137
  %v140 = vmul.f32 %v117, %v138
  %v141 = vmul.f32 %v118, %v138
  %v142 = vmul.f32 %v119, %v138
  %v143 = vmul.f32 %v120, %v138
  %v144 = vmul.f32 %v121, %v138
  %v145 = vmul.f32 %v122, %v138
  %v146 = vmul.f32 %v123, %v138
  %v147 = vmul.f32 %v124, %v138
  %v148 = vmul.f32 %v125, %v138
  %v149 = vmul.f32 %v126, %v138
  %v150 = vmul.f32 %v127, %v138
  %v151 = vmul.f32 %v128, %v138
  %v152 = vmul.f32 %v129, %v138
  %v153 = vmul.f32 %v130, %v138
  %v154 = vmul.f32 %v131, %v138
  %v155 = vmul.f32 %v132, %v138
  %v156 = vadd.f32 %v85, %v140
  %v157 = vadd.f32 %v86, %v141
  %v158 = vadd.f32 %v87, %v142
  %v159 = vadd.f32 %v88, %v143
  %v160 = vadd.f32 %v89, %v144
  %v161 = vadd.f32 %v90, %v145
  %v162 = vadd.f32 %v91, %v146
  %v163 = vadd.f32 %v92, %v147
  %v164 = vadd.f32 %v93, %v148
  %v165 = vadd.f32 %v94, %v149
  %v166 = vadd.f32 %v95, %v150
  %v167 = vadd.f32 %v96, %v151
  %v168 = vadd.f32 %v97, %v152
  %v169 = vadd.f32 %v98, %v153
  %v170 = vadd.f32 %v99, %v154
  %v171 = vadd.f32 %v100, %v155
  %v172 = vld [vmem:[%s5] sm:$0x1]
  %v174 = vlaneseq
  %v175 = vshrl.u32 %v174, 7
  %v176 = vsub.s32 0, %v175
  %v177 = vrot.slane %v172, %v176
  %v179 = vadd.f32 %v156, %v177
  %v180 = vadd.f32 %v157, %v177
  %v181 = vadd.f32 %v158, %v177
  %v182 = vadd.f32 %v159, %v177
  %v183 = vadd.f32 %v160, %v177
  %v184 = vadd.f32 %v161, %v177
  %v185 = vadd.f32 %v162, %v177
  %v186 = vadd.f32 %v163, %v177
  %v187 = vadd.f32 %v164, %v177
  %v188 = vadd.f32 %v165, %v177
  %v189 = vadd.f32 %v166, %v177
  %v190 = vadd.f32 %v167, %v177
  %v191 = vadd.f32 %v168, %v177
  %v192 = vadd.f32 %v169, %v177
  %v193 = vadd.f32 %v170, %v177
  %v194 = vadd.f32 %v171, %v177
  %v195 = vmax.f32 %v179, 0.0
  %v196 = vmax.f32 %v180, 0.0
  %v197 = vmax.f32 %v181, 0.0
  %v198 = vmax.f32 %v182, 0.0
  %v199 = vmax.f32 %v183, 0.0
  %v200 = vmax.f32 %v184, 0.0
  %v201 = vmax.f32 %v185, 0.0
  %v202 = vmax.f32 %v186, 0.0
  %v203 = vmax.f32 %v187, 0.0
  %v204 = vmax.f32 %v188, 0.0
  %v205 = vmax.f32 %v189, 0.0
  %v206 = vmax.f32 %v190, 0.0
  %v207 = vmax.f32 %v191, 0.0
  %v208 = vmax.f32 %v192, 0.0
  %v209 = vmax.f32 %v193, 0.0
  %v210 = vmax.f32 %v194, 0.0
  %v211 = vpack.c.bf16 %v196, %v195
  %v212 = vpack.c.bf16 %v198, %v197
  %v213 = vpack.c.bf16 %v200, %v199
  %v214 = vpack.c.bf16 %v202, %v201
  %v215 = vpack.c.bf16 %v204, %v203
  %v216 = vpack.c.bf16 %v206, %v205
  %v217 = vpack.c.bf16 %v208, %v207
  %v218 = vpack.c.bf16 %v210, %v209
  %v227 = vunpack.c.l.b16 %v211
  %v228 = vunpack.c.h.b16 %v211
  %v229 = vunpack.c.l.b16 %v212
  %v230 = vunpack.c.h.b16 %v212
  %v231 = vunpack.c.l.b16 %v213
  %v232 = vunpack.c.h.b16 %v213
  %v233 = vunpack.c.l.b16 %v214
  %v234 = vunpack.c.h.b16 %v214
  %v235 = vunpack.c.l.b16 %v215
  %v236 = vunpack.c.h.b16 %v215
  %v237 = vunpack.c.l.b16 %v216
  %v238 = vunpack.c.h.b16 %v216
  %v239 = vunpack.c.l.b16 %v217
  %v240 = vunpack.c.h.b16 %v217
  %v241 = vunpack.c.l.b16 %v218
  %v242 = vunpack.c.h.b16 %v218
  %v243 = vpack.c.b16 %v227, %v227
  %v244 = vpack.c.b16 %v228, %v228
  %v245 = vpack.c.b16 %v229, %v229
  %v246 = vpack.c.b16 %v230, %v230
  %v247 = vpack.c.b16 %v231, %v231
  %v248 = vpack.c.b16 %v232, %v232
  %v249 = vpack.c.b16 %v233, %v233
  %v250 = vpack.c.b16 %v234, %v234
  %v251 = vpack.c.b16 %v235, %v235
  %v252 = vpack.c.b16 %v236, %v236
  %v253 = vpack.c.b16 %v237, %v237
  %v254 = vpack.c.b16 %v238, %v238
  %v255 = vpack.c.b16 %v239, %v239
  %v256 = vpack.c.b16 %v240, %v240
  %v257 = vpack.c.b16 %v241, %v241
  %v258 = vpack.c.b16 %v242, %v242
  %275 = vst [vmem:[%s6] sm:$0xf] %v243
  %276 = vst [vmem:[%s6 + $0x4] sm:$0xf] %v244
  %277 = vst [vmem:[%s6 + $0x8] sm:$0xf] %v245
  %278 = vst [vmem:[%s6 + $0xc] sm:$0xf] %v246
  %279 = vst [vmem:[%s6 + $0x10] sm:$0xf] %v247
  %280 = vst [vmem:[%s6 + $0x14] sm:$0xf] %v248
  %281 = vst [vmem:[%s6 + $0x18] sm:$0xf] %v249
  %282 = vst [vmem:[%s6 + $0x1c] sm:$0xf] %v250
  %283 = vst [vmem:[%s6 + $0x20] sm:$0xf] %v251
  %284 = vst [vmem:[%s6 + $0x24] sm:$0xf] %v252
  %285 = vst [vmem:[%s6 + $0x28] sm:$0xf] %v253
  %286 = vst [vmem:[%s6 + $0x2c] sm:$0xf] %v254
  %287 = vst [vmem:[%s6 + $0x30] sm:$0xf] %v255
  %288 = vst [vmem:[%s6 + $0x34] sm:$0xf] %v256
  %289 = vst [vmem:[%s6 + $0x38] sm:$0xf] %v257
  %290 = vst [vmem:[%s6 + $0x3c] sm:$0xf] %v258
  // Predicated region
  $region26: #{a_call__.7} parent=0 // pred_check
    _
  $region27: #{a_call__.7} parent=0 // pred_check_branch
    %292 = sbr.rel (0) target = $region29
  $region28: #{a_call__.7} parent=0 // pred_region
    _
  $region29: #{a_call__.7} parent=0 // pred_fallthru
    _
  // Predicated region
  $region30: #{a_call__.7} parent=0 // pred_check
    _
  $region31: #{a_call__.7} parent=0 // pred_check_branch
    %294 = sbr.rel (0) target = $region33
  $region32: #{a_call__.7} parent=0 // pred_region
    _
  $region33: #{a_call__.7} parent=0 // pred_fallthru
    _

</llo_original>
